<compile_context>
chip_gen: v5e
topology: v5e:2x2
jax: 0.10.0
libtpu: 0.0.40
codegen_flags: <defaults>
</compile_context>

<pallas_src>
import functools
from typing import NamedTuple

import jax
import jax.numpy as jnp
from jax import lax
from jax.experimental import pallas as pl
from jax.experimental.pallas import tpu as pltpu


class Dims(NamedTuple):
    hid_dim: int
    emb_dim: int
    out_dim: int
    img_ctx_dim: int
    cap_ctx_dim: int
    img_attn_dim: int
    cap_attn_dim: int


def _round_up(x, m):
    return ((x + m - 1) // m) * m


def _padded_dims(d: Dims):
    return dict(
        Hp=_round_up(d.hid_dim, 128),
        Ep=_round_up(d.emb_dim, 128),   # 128 so the [emb | prev_o] pack is lane-aligned
        Vp=_round_up(d.out_dim, 128),
        Dip=_round_up(d.img_ctx_dim, 8),
        Dcp=_round_up(d.cap_ctx_dim, 8),
        Aip=_round_up(d.img_attn_dim, 128),
        Acp=_round_up(d.cap_attn_dim, 128),
    )


def _bias_layout(Hp, Aip, Acp, Vp):
    """Static lane offsets (all multiples of 128) for the packed bias buffer."""
    entries = [("b_ih", 3 * Hp), ("b_hh", 3 * Hp), ("b_hq", Aip + Acp + Hp),
               ("v_i", Aip), ("v_c", Acp), ("b_out", Vp)]
    layout, off = {}, 0
    for name, width in entries:
        layout[name] = (off, width)
        off += width
    return layout, off


# ---------------------------------------------------------------------------
# Kernel: whole decode loop in one grid step, state carried in VMEM scratch.
# ---------------------------------------------------------------------------
def decoder_kernel(
    # inputs (all VMEM-resident for the single grid step)
    emb_ref, h0_ref, o0_ref, img_enc_ref, cap_enc_ref, kp_img_ref, kp_cap_ref,
    w_ih_ref, w_hh_ref, w_hq_ref, w_ci_ref, w_cc_ref, w_out_ref, bias_ref,
    # outputs (full (T, ...) blocks, written per step, DMA'd back once)
    logits_ref, state_ref, a_img_ref,
    # VMEM scratch
    h_scr, x_scr,
    *, T, emb_pad, hid_pad, aip, acp, n_img, n_cap, bias_layout,
):
    H = hid_pad
    Ep = emb_pad

    # Packed biases, pre-broadcast to Bp sublanes; static 128-aligned lane slices.
    bias = bias_ref[...]

    def bslice(name):
        off, width = bias_layout[name]
        return bias[:, off:off + width]

    b_ih, b_hh = bslice("b_ih"), bslice("b_hh")
    b_hq = bslice("b_hq")
    v_i, v_c = bslice("v_i"), bslice("v_c")
    b_out = bslice("b_out")

    # --- one-time init -----------------------------------------------------
    h_scr[...] = h0_ref[...]
    x_scr[:, Ep:] = o0_ref[...]                 # prev_o half of the packed GRU input
    a_img_ref[...] = jnp.zeros_like(a_img_ref)  # pad lanes of attention output stay 0

    def attend(qp, kp, enc, v_b, n_valid):
        e = jnp.tanh(qp[:, None, :] + kp)                       # [B, Np, A]
        scores = jnp.sum(e * v_b[:, None, :], axis=-1)          # [B, Np]
        key_iota = lax.broadcasted_iota(jnp.int32, scores.shape, 1)
        scores = jnp.where(key_iota < n_valid, scores, -1e30)   # mask padded keys
        m = jnp.max(scores, axis=-1, keepdims=True)
        p = jnp.exp(scores - m)
        a = p / jnp.sum(p, axis=-1, keepdims=True)              # exact normalization
        ctx = jnp.sum(a[:, :, None] * enc, axis=1)              # [B, Dp]
        return ctx, a

    def step(t, carry):
        # pack GRU input: [emb_t | o_{t-1}] (o part already in place)
        x_scr[:, :Ep] = emb_ref[t]
        x = x_scr[...]                                           # [B, Ep+Hp]
        prev_h = h_scr[...]                                      # [B, Hp]

        # --- GRU (PyTorch gate order r, z, n), single fused input matmul ---
        gx = jnp.dot(x, w_ih_ref[...], preferred_element_type=jnp.float32) + b_ih
        gh = jnp.dot(prev_h, w_hh_ref[...], preferred_element_type=jnp.float32) + b_hh
        r = jax.nn.sigmoid(gx[:, 0:H] + gh[:, 0:H])
        z = jax.nn.sigmoid(gx[:, H:2 * H] + gh[:, H:2 * H])
        n = jnp.tanh(gx[:, 2 * H:3 * H] + r * gh[:, 2 * H:3 * H])
        h_t = (1.0 - z) * n + z * prev_h                         # [B, Hp]

        # --- fused h_t projection: [img query | cap query | combine-h] -----
        h_proj = jnp.dot(h_t, w_hq_ref[...], preferred_element_type=jnp.float32) + b_hq
        qp_i = h_proj[:, :aip]
        qp_c = h_proj[:, aip:aip + acp]
        comb_h = h_proj[:, aip + acp:]

        ctx_i, a_i = attend(qp_i, kp_img_ref[...], img_enc_ref[...], v_i, n_img)
        ctx_c, _ = attend(qp_c, kp_cap_ref[...], cap_enc_ref[...], v_c, n_cap)

        # --- attn_combine(concat([h_t, ctx_img, ctx_cap])) + ReLU ----------
        o_t = (comb_h
               + jnp.dot(ctx_i, w_ci_ref[...], preferred_element_type=jnp.float32)
               + jnp.dot(ctx_c, w_cc_ref[...], preferred_element_type=jnp.float32))
        o_t = jnp.maximum(o_t, 0.0)                              # [B, Hp]

        # --- output projection + log_softmax (pad vocab lanes carry -1e30) -
        out = jnp.dot(o_t, w_out_ref[...], preferred_element_type=jnp.float32) + b_out
        mx = jnp.max(out, axis=-1, keepdims=True)
        lse = mx + jnp.log(jnp.sum(jnp.exp(out - mx), axis=-1, keepdims=True))

        # per-step stores into the resident output blocks
        logits_ref[t] = out - lse
        state_ref[t, :, 0:H] = h_t
        state_ref[t, :, H:2 * H] = o_t
        nkp = a_i.shape[-1]
        a_img_ref[t, :, 0:nkp] = a_i

        # carry state to the next decode step
        h_scr[...] = h_t
        x_scr[:, Ep:] = o_t
        return carry

    lax.fori_loop(0, T, step, 0, unroll=bool(T <= 8))


# ---------------------------------------------------------------------------
# Parameter construction / packing (wrapper-side, done once)
# ---------------------------------------------------------------------------
def init_params(key, dims: Dims):
    ks = iter(jax.random.split(key, 24))

    def w(shape, scale=0.1):
        return (scale * jax.random.normal(next(ks), shape)).astype(jnp.float32)

    H, E, V = dims.hid_dim, dims.emb_dim, dims.out_dim
    Di, Dc = dims.img_ctx_dim, dims.cap_ctx_dim
    Ai, Ac = dims.img_attn_dim, dims.cap_attn_dim
    return dict(
        emb_tbl=w((V, E)),
        w_ih=w((E + H, 3 * H)), b_ih=w((1, 3 * H)),
        w_hh=w((H, 3 * H)), b_hh=w((1, 3 * H)),
        wq_i=w((H, Ai)), bq_i=w((1, Ai)), wk_i=w((Di, Ai)), bk_i=w((1, Ai)), v_i=w((1, Ai)),
        wq_c=w((H, Ac)), bq_c=w((1, Ac)), wk_c=w((Dc, Ac)), bk_c=w((1, Ac)), v_c=w((1, Ac)),
        w_comb=w((H + Di + Dc, H)), b_comb=w((1, H)),
        w_out=w((H, V)), b_out=w((1, V)),
    )


def prepare_params(params, dims: Dims):
    """Pad / split / fuse weights into the kernel-friendly layout."""
    H, E, V = dims.hid_dim, dims.emb_dim, dims.out_dim
    Di, Dc = dims.img_ctx_dim, dims.cap_ctx_dim
    Ai, Ac = dims.img_attn_dim, dims.cap_attn_dim
    pd = _padded_dims(dims)
    Hp, Ep, Vp = pd["Hp"], pd["Ep"], pd["Vp"]
    Dip, Dcp, Aip, Acp = pd["Dip"], pd["Dcp"], pd["Aip"], pd["Acp"]
    f32 = jnp.float32

    def gate_pad(wm):  # [..., 3H] -> [..., 3Hp], each gate in its own Hp slot
        out = jnp.zeros(wm.shape[:-1] + (3 * Hp,), f32)
        for g in range(3):
            out = out.at[..., g * Hp:g * Hp + H].set(wm[..., g * H:(g + 1) * H])
        return out

    def pad2(x, shape):
        out = jnp.zeros(shape, f32)
        return out.at[tuple(slice(0, s) for s in x.shape)].set(x)

    # fused GRU input weight over packed [emb (Ep lanes) | prev_o (Hp lanes)]
    w_ih_cat = jnp.zeros((Ep + Hp, 3 * Hp), f32)
    w_ih_cat = w_ih_cat.at[:E].set(gate_pad(params["w_ih"][:E]))
    w_ih_cat = w_ih_cat.at[Ep:Ep + H].set(gate_pad(params["w_ih"][E:]))
    w_hh = pad2(gate_pad(params["w_hh"]), (Hp, 3 * Hp))
    b_ih = gate_pad(params["b_ih"])
    b_hh = gate_pad(params["b_hh"])

    # fused h_t projection: [Wq_img | Wq_cap | Wcomb_h]
    w_comb = params["w_comb"]
    w_hq = jnp.zeros((Hp, Aip + Acp + Hp), f32)
    w_hq = w_hq.at[:H, :Ai].set(params["wq_i"])
    w_hq = w_hq.at[:H, Aip:Aip + Ac].set(params["wq_c"])
    w_hq = w_hq.at[:H, Aip + Acp:Aip + Acp + H].set(w_comb[:H])
    b_hq = jnp.zeros((1, Aip + Acp + Hp), f32)
    b_hq = b_hq.at[:, :Ai].set(params["bq_i"])
    b_hq = b_hq.at[:, Aip:Aip + Ac].set(params["bq_c"])
    b_hq = b_hq.at[:, Aip + Acp:Aip + Acp + H].set(params["b_comb"])

    v_i = pad2(params["v_i"], (1, Aip))
    v_c = pad2(params["v_c"], (1, Acp))

    w_comb_i = pad2(w_comb[H:H + Di], (Dip, Hp))
    w_comb_c = pad2(w_comb[H + Di:], (Dcp, Hp))

    w_out = pad2(params["w_out"], (Hp, Vp))
    # bake the vocab-padding mask into the bias -> no in-kernel masking needed
    b_out = jnp.full((1, Vp), -1e30, f32).at[:, :V].set(params["b_out"])

    layout, total = _bias_layout(Hp, Aip, Acp, Vp)
    bias_cat = jnp.zeros((1, total), f32)
    for name, arr in [("b_ih", b_ih), ("b_hh", b_hh), ("b_hq", b_hq),
                      ("v_i", v_i), ("v_c", v_c), ("b_out", b_out)]:
        off, width = layout[name]
        bias_cat = bias_cat.at[:, off:off + width].set(arr)

    return dict(
        emb_tbl=pad2(params["emb_tbl"], (V, Ep)),
        w_ih_cat=w_ih_cat, w_hh=w_hh, w_hq=w_hq,
        w_comb_i=w_comb_i, w_comb_c=w_comb_c, w_out=w_out,
        bias_cat=bias_cat,
        # kept unpadded for the wrapper-side (hoisted) key projections
        wk_i=params["wk_i"], bk_i=params["bk_i"],
        wk_c=params["wk_c"], bk_c=params["bk_c"],
    )


# ---------------------------------------------------------------------------
# Fused multi-step decode: one pallas_call, T decode steps inside the kernel.
# ---------------------------------------------------------------------------
@functools.partial(jax.jit, static_argnames=("dims",))
def decode_sequence(packed, tokens, h0, o0, cap_enc, img_enc, *, dims: Dims):
    d = dims
    pd = _padded_dims(d)
    Hp, Ep, Vp = pd["Hp"], pd["Ep"], pd["Vp"]
    Dip, Dcp, Aip, Acp = pd["Dip"], pd["Dcp"], pd["Aip"], pd["Acp"]
    f32 = jnp.float32

    T, B = tokens.shape
    # NOTE: per review, throughput scales almost for free with batch up to the
    # MXU row count (128 / 256); pad only to the sublane minimum here.
    Bp = _round_up(B, 8)
    Ni, Nc = img_enc.shape[1], cap_enc.shape[1]
    Nip, Ncp = _round_up(Ni, 8), _round_up(Nc, 8)
    Nap = 128   # lane-dense attention-weight output

    # --- hoisted embedding lookup (no in-kernel gather) ---
    emb_seq = jnp.take(packed["emb_tbl"], tokens.astype(jnp.int32), axis=0)  # [T,B,Ep]
    emb_p = jnp.zeros((T, Bp, Ep), f32).at[:, :B].set(emb_seq)

    # --- pad activations / inputs ---
    h0_p = jnp.zeros((Bp, Hp), f32).at[:B, :d.hid_dim].set(h0)
    o0_p = jnp.zeros((Bp, Hp), f32).at[:B, :d.hid_dim].set(o0)
    img_enc_p = jnp.zeros((Bp, Nip, Dip), f32).at[:B, :Ni, :d.img_ctx_dim].set(img_enc)
    cap_enc_p = jnp.zeros((Bp, Ncp, Dcp), f32).at[:B, :Nc, :d.cap_ctx_dim].set(cap_enc)

    # --- hoisted step-invariant key projections (computed once per sequence) ---
    kp_img = jnp.einsum("bnd,da->bna", img_enc, packed["wk_i"]) + packed["bk_i"][None]
    kp_cap = jnp.einsum("bnd,da->bna", cap_enc, packed["wk_c"]) + packed["bk_c"][None]
    kp_img_p = jnp.zeros((Bp, Nip, Aip), f32).at[:B, :Ni, :d.img_attn_dim].set(kp_img)
    kp_cap_p = jnp.zeros((Bp, Ncp, Acp), f32).at[:B, :Nc, :d.cap_attn_dim].set(kp_cap)

    layout, total = _bias_layout(Hp, Aip, Acp, Vp)
    bias_b = jnp.tile(packed["bias_cat"], (Bp, 1))   # pre-broadcast to Bp sublanes

    kernel = functools.partial(
        decoder_kernel, T=T, emb_pad=Ep, hid_pad=Hp, aip=Aip, acp=Acp,
        n_img=Ni, n_cap=Nc, bias_layout=layout)

    c2 = lambda i: (0, 0)
    c3 = lambda i: (0, 0, 0)
    in_specs = [
        pl.BlockSpec((T, Bp, Ep), c3),             # emb_seq
        pl.BlockSpec((Bp, Hp), c2),                # h0
        pl.BlockSpec((Bp, Hp), c2),                # o0
        pl.BlockSpec((Bp, Nip, Dip), c3),          # img_enc
        pl.BlockSpec((Bp, Ncp, Dcp), c3),          # cap_enc
        pl.BlockSpec((Bp, Nip, Aip), c3),          # kp_img
        pl.BlockSpec((Bp, Ncp, Acp), c3),          # kp_cap
        pl.BlockSpec((Ep + Hp, 3 * Hp), c2),       # w_ih_cat
        pl.BlockSpec((Hp, 3 * Hp), c2),            # w_hh
        pl.BlockSpec((Hp, Aip + Acp + Hp), c2),    # w_hq
        pl.BlockSpec((Dip, Hp), c2),               # w_comb_i
        pl.BlockSpec((Dcp, Hp), c2),               # w_comb_c
        pl.BlockSpec((Hp, Vp), c2),                # w_out
        pl.BlockSpec((Bp, total), c2),             # packed biases (Bp sublanes)
    ]
    out_specs = [
        pl.BlockSpec((T, Bp, Vp), c3),             # log-softmax logits
        pl.BlockSpec((T, Bp, 2 * Hp), c3),         # [h_t | o_t] merged
        pl.BlockSpec((T, Bp, Nap), c3),            # image attention weights (128 lanes)
    ]
    out_shape = (
        jax.ShapeDtypeStruct((T, Bp, Vp), f32),
        jax.ShapeDtypeStruct((T, Bp, 2 * Hp), f32),
        jax.ShapeDtypeStruct((T, Bp, Nap), f32),
    )

    logits, state, a_seq = pl.pallas_call(
        kernel,
        grid=(1,),
        in_specs=in_specs,
        out_specs=out_specs,
        out_shape=out_shape,
        scratch_shapes=[pltpu.VMEM((Bp, Hp), f32),        # h carry
                        pltpu.VMEM((Bp, Ep + Hp), f32)],  # packed [emb | prev_o]
        compiler_params=pltpu.CompilerParams(
            dimension_semantics=("arbitrary",),
            vmem_limit_bytes=32 * 1024 * 1024),
    )(emb_p, h0_p, o0_p, img_enc_p, cap_enc_p, kp_img_p, kp_cap_p,
      packed["w_ih_cat"], packed["w_hh"], packed["w_hq"],
      packed["w_comb_i"], packed["w_comb_c"], packed["w_out"], bias_b)

    return (logits[:, :B, :d.out_dim],
            state[:, :B, :d.hid_dim],
            state[:, :B, Hp:Hp + d.hid_dim],
            a_seq[:, :B, :Ni])


def attention_decoder_forward(packed, input_tok, hidden, caption_encoder_outputs,
                              image_encoder_outputs, *, dims: Dims):
    """Single-step forward matching the PyTorch module.
    input_tok: [1,B,1] int; hidden = (prev_h, prev_o) each [1,B,H];
    returns (logits [1,B,V], (h_t [1,B,H], o_t [1,B,H]), a_t [B,n_img])."""
    prev_h, prev_o = hidden
    _, B, _ = input_tok.shape
    tokens = input_tok.reshape(1, B)
    logits, h_seq, o_seq, a_seq = decode_sequence(
        packed, tokens,
        prev_h.reshape(B, dims.hid_dim), prev_o.reshape(B, dims.hid_dim),
        caption_encoder_outputs, image_encoder_outputs, dims=dims)
    return logits, (h_seq, o_seq), a_seq[0]


if __name__ == "__main__":
    dims = Dims(hid_dim=32, emb_dim=16, out_dim=24, img_ctx_dim=20, cap_ctx_dim=28,
                img_attn_dim=16, cap_attn_dim=16)
    batch, n_img, n_cap = 2, 10, 7

    key = jax.random.PRNGKey(0)
    k_par, k_tok, k_cap, k_img = jax.random.split(key, 4)
    params = init_params(k_par, dims)
    packed = prepare_params(params, dims)

    input_tok = jax.random.randint(k_tok, (1, batch, 1), 0, dims.out_dim, dtype=jnp.int32)
    h0 = jnp.zeros((1, batch, dims.hid_dim), jnp.float32)   # initHidden
    o0 = jnp.zeros((1, batch, dims.hid_dim), jnp.float32)
    cap_enc = jax.random.normal(k_cap, (batch, n_cap, dims.cap_ctx_dim), dtype=jnp.float32)
    img_enc = jax.random.normal(k_img, (batch, n_img, dims.img_ctx_dim), dtype=jnp.float32)

    # single-step forward (PyTorch-equivalent signature)
    logits, (h_t, o_t), a_t = attention_decoder_forward(
        packed, input_tok, (h0, o0), cap_enc, img_enc, dims=dims)
    jax.block_until_ready((logits, h_t, o_t, a_t))

    assert logits.shape == (1, batch, dims.out_dim)
    assert h_t.shape == (1, batch, dims.hid_dim) and o_t.shape == (1, batch, dims.hid_dim)
    assert a_t.shape == (batch, n_img)
    assert bool(jnp.all(jnp.isfinite(logits)))
    assert bool(jnp.allclose(jnp.sum(jnp.exp(logits), axis=-1), 1.0, atol=1e-3))
    assert bool(jnp.allclose(jnp.sum(a_t, axis=-1), 1.0, atol=1e-3))

    # fused multi-step (teacher-forced) decode exercising the in-kernel time loop
    T = 4
    tok_seq = jax.random.randint(k_tok, (T, batch), 0, dims.out_dim, dtype=jnp.int32)
    lg, hs, osq, ats = decode_sequence(
        packed, tok_seq,
        jnp.zeros((batch, dims.hid_dim), jnp.float32),
        jnp.zeros((batch, dims.hid_dim), jnp.float32),
        cap_enc, img_enc, dims=dims)
    jax.block_until_ready((lg, hs, osq, ats))
    assert lg.shape == (T, batch, dims.out_dim)
    assert hs.shape == (T, batch, dims.hid_dim) and osq.shape == (T, batch, dims.hid_dim)
    assert ats.shape == (T, batch, n_img)
    assert bool(jnp.allclose(jnp.sum(ats, axis=-1), 1.0, atol=1e-3))

    print("KERNEL_OK")
</pallas_src>

<mosaic_0001>
module attributes {stable_mosaic.version = 11 : i64} {
  func.func @decoder_kernel(%arg0: i32, %arg1: memref<1x8x128xf32, #tpu.memory_space<vmem>>, %arg2: memref<8x128xf32, #tpu.memory_space<vmem>>, %arg3: memref<8x128xf32, #tpu.memory_space<vmem>>, %arg4: memref<8x16x24xf32, #tpu.memory_space<vmem>>, %arg5: memref<8x8x32xf32, #tpu.memory_space<vmem>>, %arg6: memref<8x16x128xf32, #tpu.memory_space<vmem>>, %arg7: memref<8x8x128xf32, #tpu.memory_space<vmem>>, %arg8: memref<256x384xf32, #tpu.memory_space<vmem>>, %arg9: memref<128x384xf32, #tpu.memory_space<vmem>>, %arg10: memref<128x384xf32, #tpu.memory_space<vmem>>, %arg11: memref<24x128xf32, #tpu.memory_space<vmem>>, %arg12: memref<32x128xf32, #tpu.memory_space<vmem>>, %arg13: memref<128x128xf32, #tpu.memory_space<vmem>>, %arg14: memref<8x1536xf32, #tpu.memory_space<vmem>>, %arg15: memref<1x8x128xf32, #tpu.memory_space<vmem>>, %arg16: memref<1x8x256xf32, #tpu.memory_space<vmem>>, %arg17: memref<1x8x128xf32, #tpu.memory_space<vmem>>, %arg18: memref<8x128xf32, #tpu.memory_space<vmem>>, %arg19: memref<8x256xf32, #tpu.memory_space<vmem>>) attributes {dimension_semantics = [#tpu.dimension_semantics<arbitrary>], iteration_bounds = array<i64: 1>, scalar_prefetch = 0 : i64, scratch_operands = 2 : i64, tpu.core_type = #tpu.core_type<tc>, window_params = [{pipeline_mode = #tpu.pipeline_mode<synchronous>, transform_indices = @transform_0, window_bounds = array<i64: 1, 8, 128>}, {pipeline_mode = #tpu.pipeline_mode<synchronous>, transform_indices = @transform_1, window_bounds = array<i64: 8, 128>}, {pipeline_mode = #tpu.pipeline_mode<synchronous>, transform_indices = @transform_2, window_bounds = array<i64: 8, 128>}, {pipeline_mode = #tpu.pipeline_mode<synchronous>, transform_indices = @transform_3, window_bounds = array<i64: 8, 16, 24>}, {pipeline_mode = #tpu.pipeline_mode<synchronous>, transform_indices = @transform_4, window_bounds = array<i64: 8, 8, 32>}, {pipeline_mode = #tpu.pipeline_mode<synchronous>, transform_indices = @transform_5, window_bounds = array<i64: 8, 16, 128>}, {pipeline_mode = #tpu.pipeline_mode<synchronous>, transform_indices = @transform_6, window_bounds = array<i64: 8, 8, 128>}, {pipeline_mode = #tpu.pipeline_mode<synchronous>, transform_indices = @transform_7, window_bounds = array<i64: 256, 384>}, {pipeline_mode = #tpu.pipeline_mode<synchronous>, transform_indices = @transform_8, window_bounds = array<i64: 128, 384>}, {pipeline_mode = #tpu.pipeline_mode<synchronous>, transform_indices = @transform_9, window_bounds = array<i64: 128, 384>}, {pipeline_mode = #tpu.pipeline_mode<synchronous>, transform_indices = @transform_10, window_bounds = array<i64: 24, 128>}, {pipeline_mode = #tpu.pipeline_mode<synchronous>, transform_indices = @transform_11, window_bounds = array<i64: 32, 128>}, {pipeline_mode = #tpu.pipeline_mode<synchronous>, transform_indices = @transform_12, window_bounds = array<i64: 128, 128>}, {pipeline_mode = #tpu.pipeline_mode<synchronous>, transform_indices = @transform_13, window_bounds = array<i64: 8, 1536>}, {pipeline_mode = #tpu.pipeline_mode<synchronous>, transform_indices = @transform_14, window_bounds = array<i64: 1, 8, 128>}, {pipeline_mode = #tpu.pipeline_mode<synchronous>, transform_indices = @transform_15, window_bounds = array<i64: 1, 8, 256>}, {pipeline_mode = #tpu.pipeline_mode<synchronous>, transform_indices = @transform_16, window_bounds = array<i64: 1, 8, 128>}]} {
    %c0 = arith.constant 0 : index
    %c0_0 = arith.constant 0 : index
    %0 = vector.load %arg14[%c0, %c0_0] : memref<8x1536xf32, #tpu.memory_space<vmem>>, vector<8x1536xf32>
    %1 = vector.extract_strided_slice %0 {offsets = [0, 0], sizes = [8, 384], strides = [1, 1]} : vector<8x1536xf32> to vector<8x384xf32>
    %2 = vector.extract_strided_slice %0 {offsets = [0, 384], sizes = [8, 384], strides = [1, 1]} : vector<8x1536xf32> to vector<8x384xf32>
    %3 = vector.extract_strided_slice %0 {offsets = [0, 768], sizes = [8, 384], strides = [1, 1]} : vector<8x1536xf32> to vector<8x384xf32>
    %4 = vector.extract_strided_slice %0 {offsets = [0, 1152], sizes = [8, 128], strides = [1, 1]} : vector<8x1536xf32> to vector<8x128xf32>
    %5 = vector.extract_strided_slice %0 {offsets = [0, 1280], sizes = [8, 128], strides = [1, 1]} : vector<8x1536xf32> to vector<8x128xf32>
    %6 = vector.extract_strided_slice %0 {offsets = [0, 1408], sizes = [8, 128], strides = [1, 1]} : vector<8x1536xf32> to vector<8x128xf32>
    %c0_1 = arith.constant 0 : index
    %c0_2 = arith.constant 0 : index
    %7 = vector.load %arg2[%c0_1, %c0_2] : memref<8x128xf32, #tpu.memory_space<vmem>>, vector<8x128xf32>
    %c0_3 = arith.constant 0 : index
    %c0_4 = arith.constant 0 : index
    %8 = vector.load %arg18[%c0_3, %c0_4] : memref<8x128xf32, #tpu.memory_space<vmem>>, vector<8x128xf32>
    tpu.vector_store %arg18[%c0_3, %c0_4], %7 {strides = array<i32>} : memref<8x128xf32, #tpu.memory_space<vmem>>, vector<8x128xf32>,
    %c0_5 = arith.constant 0 : index
    %c0_6 = arith.constant 0 : index
    %9 = vector.load %arg3[%c0_5, %c0_6] : memref<8x128xf32, #tpu.memory_space<vmem>>, vector<8x128xf32>
    %c0_7 = arith.constant 0 : index
    %c128 = arith.constant 128 : index
    %10 = vector.load %arg19[%c0_7, %c128] : memref<8x256xf32, #tpu.memory_space<vmem>>, vector<8x128xf32>
    tpu.vector_store %arg19[%c0_7, %c128], %9 {strides = array<i32>} : memref<8x256xf32, #tpu.memory_space<vmem>>, vector<8x128xf32>,
    %cst = arith.constant 0.000000e+00 : f32
    %11 = vector.broadcast %cst : f32 to vector<1x8x128xf32>
    %c0_8 = arith.constant 0 : index
    %c0_9 = arith.constant 0 : index
    %c0_10 = arith.constant 0 : index
    %12 = vector.load %arg17[%c0_8, %c0_9, %c0_10] : memref<1x8x128xf32, #tpu.memory_space<vmem>>, vector<1x8x128xf32>
    tpu.vector_store %arg17[%c0_8, %c0_9, %c0_10], %11 {strides = array<i32>} : memref<1x8x128xf32, #tpu.memory_space<vmem>>, vector<1x8x128xf32>,
    %c0_i32 = arith.constant 0 : i32
    %13 = arith.index_cast %c0_i32 : i32 to index
    %c0_11 = arith.constant 0 : index
    %c0_12 = arith.constant 0 : index
    %14 = vector.load %arg1[%13, %c0_11, %c0_12] : memref<1x8x128xf32, #tpu.memory_space<vmem>>, vector<1x8x128xf32>
    %15 = vector.shape_cast %14 : vector<1x8x128xf32> to vector<8x128xf32>
    %c0_13 = arith.constant 0 : index
    %c0_14 = arith.constant 0 : index
    %16 = vector.load %arg19[%c0_13, %c0_14] : memref<8x256xf32, #tpu.memory_space<vmem>>, vector<8x128xf32>
    tpu.vector_store %arg19[%c0_13, %c0_14], %15 {strides = array<i32>} : memref<8x256xf32, #tpu.memory_space<vmem>>, vector<8x128xf32>,
    %c0_15 = arith.constant 0 : index
    %c0_16 = arith.constant 0 : index
    %17 = vector.load %arg19[%c0_15, %c0_16] : memref<8x256xf32, #tpu.memory_space<vmem>>, vector<8x256xf32>
    %c0_17 = arith.constant 0 : index
    %c0_18 = arith.constant 0 : index
    %18 = vector.load %arg18[%c0_17, %c0_18] : memref<8x128xf32, #tpu.memory_space<vmem>>, vector<8x128xf32>
    %c0_19 = arith.constant 0 : index
    %c0_20 = arith.constant 0 : index
    %19 = vector.load %arg8[%c0_19, %c0_20] : memref<256x384xf32, #tpu.memory_space<vmem>>, vector<256x384xf32>
    %cst_21 = arith.constant dense<0.000000e+00> : vector<8x384xf32>
    %20 = tpu.matmul %17, %19, %cst_21 {dimension_numbers = #tpu.dot_dimension_numbers<[1], [0], [0], [1], [0, 0, 1, 1], [], []>} : vector<8x256xf32>, vector<256x384xf32>, vector<8x384xf32> -> vector<8x384xf32>
    %21 = arith.addf %20, %1 : vector<8x384xf32>
    %c0_22 = arith.constant 0 : index
    %c0_23 = arith.constant 0 : index
    %22 = vector.load %arg9[%c0_22, %c0_23] : memref<128x384xf32, #tpu.memory_space<vmem>>, vector<128x384xf32>
    %cst_24 = arith.constant dense<0.000000e+00> : vector<8x384xf32>
    %23 = tpu.matmul %18, %22, %cst_24 {dimension_numbers = #tpu.dot_dimension_numbers<[1], [0], [0], [1], [0, 0, 1, 1], [], []>} : vector<8x128xf32>, vector<128x384xf32>, vector<8x384xf32> -> vector<8x384xf32>
    %24 = arith.addf %23, %2 : vector<8x384xf32>
    %25 = vector.extract_strided_slice %21 {offsets = [0, 0], sizes = [8, 128], strides = [1, 1]} : vector<8x384xf32> to vector<8x128xf32>
    %26 = vector.extract_strided_slice %24 {offsets = [0, 0], sizes = [8, 128], strides = [1, 1]} : vector<8x384xf32> to vector<8x128xf32>
    %27 = arith.addf %25, %26 : vector<8x128xf32>
    %28 = arith.negf %27 : vector<8x128xf32>
    %29 = math.exp %28 : vector<8x128xf32>
    %cst_25 = arith.constant 1.000000e+00 : f32
    %30 = vector.broadcast %cst_25 : f32 to vector<8x128xf32>
    %31 = arith.addf %30, %29 : vector<8x128xf32>
    %32 = arith.divf %30, %31 : vector<8x128xf32>
    %33 = vector.extract_strided_slice %21 {offsets = [0, 128], sizes = [8, 128], strides = [1, 1]} : vector<8x384xf32> to vector<8x128xf32>
    %34 = vector.extract_strided_slice %24 {offsets = [0, 128], sizes = [8, 128], strides = [1, 1]} : vector<8x384xf32> to vector<8x128xf32>
    %35 = arith.addf %33, %34 : vector<8x128xf32>
    %36 = arith.negf %35 : vector<8x128xf32>
    %37 = math.exp %36 : vector<8x128xf32>
    %cst_26 = arith.constant 1.000000e+00 : f32
    %38 = vector.broadcast %cst_26 : f32 to vector<8x128xf32>
    %39 = arith.addf %38, %37 : vector<8x128xf32>
    %40 = arith.divf %38, %39 : vector<8x128xf32>
    %41 = vector.extract_strided_slice %21 {offsets = [0, 256], sizes = [8, 128], strides = [1, 1]} : vector<8x384xf32> to vector<8x128xf32>
    %42 = vector.extract_strided_slice %24 {offsets = [0, 256], sizes = [8, 128], strides = [1, 1]} : vector<8x384xf32> to vector<8x128xf32>
    %43 = arith.mulf %32, %42 : vector<8x128xf32>
    %44 = arith.addf %41, %43 : vector<8x128xf32>
    %45 = math.tanh %44 : vector<8x128xf32>
    %cst_27 = arith.constant 1.000000e+00 : f32
    %46 = vector.broadcast %cst_27 : f32 to vector<8x128xf32>
    %47 = arith.subf %46, %40 : vector<8x128xf32>
    %48 = arith.mulf %47, %45 : vector<8x128xf32>
    %49 = arith.mulf %40, %18 : vector<8x128xf32>
    %50 = arith.addf %48, %49 : vector<8x128xf32>
    %c0_28 = arith.constant 0 : index
    %c0_29 = arith.constant 0 : index
    %51 = vector.load %arg10[%c0_28, %c0_29] : memref<128x384xf32, #tpu.memory_space<vmem>>, vector<128x384xf32>
    %cst_30 = arith.constant dense<0.000000e+00> : vector<8x384xf32>
    %52 = tpu.matmul %50, %51, %cst_30 {dimension_numbers = #tpu.dot_dimension_numbers<[1], [0], [0], [1], [0, 0, 1, 1], [], []>} : vector<8x128xf32>, vector<128x384xf32>, vector<8x384xf32> -> vector<8x384xf32>
    %53 = arith.addf %52, %3 : vector<8x384xf32>
    %54 = vector.extract_strided_slice %53 {offsets = [0, 0], sizes = [8, 128], strides = [1, 1]} : vector<8x384xf32> to vector<8x128xf32>
    %55 = vector.extract_strided_slice %53 {offsets = [0, 128], sizes = [8, 128], strides = [1, 1]} : vector<8x384xf32> to vector<8x128xf32>
    %56 = vector.extract_strided_slice %53 {offsets = [0, 256], sizes = [8, 128], strides = [1, 1]} : vector<8x384xf32> to vector<8x128xf32>
    %c0_31 = arith.constant 0 : index
    %c0_32 = arith.constant 0 : index
    %c0_33 = arith.constant 0 : index
    %57 = vector.load %arg6[%c0_31, %c0_32, %c0_33] : memref<8x16x128xf32, #tpu.memory_space<vmem>>, vector<8x16x128xf32>
    %c0_34 = arith.constant 0 : index
    %c0_35 = arith.constant 0 : index
    %c0_36 = arith.constant 0 : index
    %58 = vector.load %arg4[%c0_34, %c0_35, %c0_36] : memref<8x16x24xf32, #tpu.memory_space<vmem>>, vector<8x16x24xf32>
    %59 = vector.shape_cast %54 : vector<8x128xf32> to vector<8x1x128xf32>
    %60 = vector.broadcast %59 : vector<8x1x128xf32> to vector<8x16x128xf32>
    %61 = arith.addf %60, %57 : vector<8x16x128xf32>
    %62 = math.tanh %61 : vector<8x16x128xf32>
    %63 = vector.shape_cast %4 : vector<8x128xf32> to vector<8x1x128xf32>
    %64 = vector.broadcast %63 : vector<8x1x128xf32> to vector<8x16x128xf32>
    %65 = arith.mulf %62, %64 : vector<8x16x128xf32>
    %cst_37 = arith.constant dense<0.000000e+00> : vector<8x16xf32>
    %66 = vector.multi_reduction <add>, %65, %cst_37 [2] : vector<8x16x128xf32> to vector<8x16xf32>
    %67 = tpu.iota {dimensions = array<i32: 1>} : vector<8x16xi32>
    %c10_i32 = arith.constant 10 : i32
    %68 = vector.broadcast %c10_i32 : i32 to vector<8x16xi32>
    %69 = arith.cmpi slt, %67, %68 : vector<8x16xi32>
    %cst_38 = arith.constant -1.000000e+30 : f32
    %70 = vector.broadcast %cst_38 : f32 to vector<8x16xf32>
    %71 = arith.select %69, %66, %70 : vector<8x16xi1>, vector<8x16xf32>
    %cst_39 = arith.constant dense<0xFF800000> : vector<8xf32>
    %72 = vector.multi_reduction <maximumf>, %71, %cst_39 [1] : vector<8x16xf32> to vector<8xf32>
    %73 = vector.shape_cast %72 : vector<8xf32> to vector<8x1xf32>
    %74 = vector.broadcast %73 : vector<8x1xf32> to vector<8x16xf32>
    %75 = arith.subf %71, %74 : vector<8x16xf32>
    %76 = math.exp %75 : vector<8x16xf32>
    %cst_40 = arith.constant dense<0.000000e+00> : vector<8xf32>
    %77 = vector.multi_reduction <add>, %76, %cst_40 [1] : vector<8x16xf32> to vector<8xf32>
    %78 = vector.shape_cast %77 : vector<8xf32> to vector<8x1xf32>
    %79 = vector.broadcast %78 : vector<8x1xf32> to vector<8x16xf32>
    %80 = arith.divf %76, %79 : vector<8x16xf32>
    %81 = vector.shape_cast %80 : vector<8x16xf32> to vector<8x16x1xf32>
    %82 = vector.broadcast %81 : vector<8x16x1xf32> to vector<8x16x24xf32>
    %83 = arith.mulf %82, %58 : vector<8x16x24xf32>
    %cst_41 = arith.constant dense<0.000000e+00> : vector<8x24xf32>
    %84 = vector.multi_reduction <add>, %83, %cst_41 [1] : vector<8x16x24xf32> to vector<8x24xf32>
    %c0_42 = arith.constant 0 : index
    %c0_43 = arith.constant 0 : index
    %c0_44 = arith.constant 0 : index
    %85 = vector.load %arg7[%c0_42, %c0_43, %c0_44] : memref<8x8x128xf32, #tpu.memory_space<vmem>>, vector<8x8x128xf32>
    %c0_45 = arith.constant 0 : index
    %c0_46 = arith.constant 0 : index
    %c0_47 = arith.constant 0 : index
    %86 = vector.load %arg5[%c0_45, %c0_46, %c0_47] : memref<8x8x32xf32, #tpu.memory_space<vmem>>, vector<8x8x32xf32>
    %87 = vector.shape_cast %55 : vector<8x128xf32> to vector<8x1x128xf32>
    %88 = vector.broadcast %87 : vector<8x1x128xf32> to vector<8x8x128xf32>
    %89 = arith.addf %88, %85 : vector<8x8x128xf32>
    %90 = math.tanh %89 : vector<8x8x128xf32>
    %91 = vector.shape_cast %5 : vector<8x128xf32> to vector<8x1x128xf32>
    %92 = vector.broadcast %91 : vector<8x1x128xf32> to vector<8x8x128xf32>
    %93 = arith.mulf %90, %92 : vector<8x8x128xf32>
    %cst_48 = arith.constant dense<0.000000e+00> : vector<8x8xf32>
    %94 = vector.multi_reduction <add>, %93, %cst_48 [2] : vector<8x8x128xf32> to vector<8x8xf32>
    %95 = tpu.iota {dimensions = array<i32: 1>} : vector<8x8xi32>
    %c7_i32 = arith.constant 7 : i32
    %96 = vector.broadcast %c7_i32 : i32 to vector<8x8xi32>
    %97 = arith.cmpi slt, %95, %96 : vector<8x8xi32>
    %cst_49 = arith.constant -1.000000e+30 : f32
    %98 = vector.broadcast %cst_49 : f32 to vector<8x8xf32>
    %99 = arith.select %97, %94, %98 : vector<8x8xi1>, vector<8x8xf32>
    %cst_50 = arith.constant dense<0xFF800000> : vector<8xf32>
    %100 = vector.multi_reduction <maximumf>, %99, %cst_50 [1] : vector<8x8xf32> to vector<8xf32>
    %101 = vector.shape_cast %100 : vector<8xf32> to vector<8x1xf32>
    %102 = vector.broadcast %101 : vector<8x1xf32> to vector<8x8xf32>
    %103 = arith.subf %99, %102 : vector<8x8xf32>
    %104 = math.exp %103 : vector<8x8xf32>
    %cst_51 = arith.constant dense<0.000000e+00> : vector<8xf32>
    %105 = vector.multi_reduction <add>, %104, %cst_51 [1] : vector<8x8xf32> to vector<8xf32>
    %106 = vector.shape_cast %105 : vector<8xf32> to vector<8x1xf32>
    %107 = vector.broadcast %106 : vector<8x1xf32> to vector<8x8xf32>
    %108 = arith.divf %104, %107 : vector<8x8xf32>
    %109 = vector.shape_cast %108 : vector<8x8xf32> to vector<8x8x1xf32>
    %110 = vector.broadcast %109 : vector<8x8x1xf32> to vector<8x8x32xf32>
    %111 = arith.mulf %110, %86 : vector<8x8x32xf32>
    %cst_52 = arith.constant dense<0.000000e+00> : vector<8x32xf32>
    %112 = vector.multi_reduction <add>, %111, %cst_52 [1] : vector<8x8x32xf32> to vector<8x32xf32>
    %c0_53 = arith.constant 0 : index
    %c0_54 = arith.constant 0 : index
    %113 = vector.load %arg11[%c0_53, %c0_54] : memref<24x128xf32, #tpu.memory_space<vmem>>, vector<24x128xf32>
    %cst_55 = arith.constant dense<0.000000e+00> : vector<8x128xf32>
    %114 = tpu.matmul %84, %113, %cst_55 {dimension_numbers = #tpu.dot_dimension_numbers<[1], [0], [0], [1], [0, 0, 1, 1], [], []>} : vector<8x24xf32>, vector<24x128xf32>, vector<8x128xf32> -> vector<8x128xf32>
    %115 = arith.addf %56, %114 : vector<8x128xf32>
    %c0_56 = arith.constant 0 : index
    %c0_57 = arith.constant 0 : index
    %116 = vector.load %arg12[%c0_56, %c0_57] : memref<32x128xf32, #tpu.memory_space<vmem>>, vector<32x128xf32>
    %cst_58 = arith.constant dense<0.000000e+00> : vector<8x128xf32>
    %117 = tpu.matmul %112, %116, %cst_58 {dimension_numbers = #tpu.dot_dimension_numbers<[1], [0], [0], [1], [0, 0, 1, 1], [], []>} : vector<8x32xf32>, vector<32x128xf32>, vector<8x128xf32> -> vector<8x128xf32>
    %118 = arith.addf %115, %117 : vector<8x128xf32>
    %cst_59 = arith.constant 0.000000e+00 : f32
    %119 = vector.broadcast %cst_59 : f32 to vector<8x128xf32>
    %120 = arith.maximumf %118, %119 : vector<8x128xf32>
    %c0_60 = arith.constant 0 : index
    %c0_61 = arith.constant 0 : index
    %121 = vector.load %arg13[%c0_60, %c0_61] : memref<128x128xf32, #tpu.memory_space<vmem>>, vector<128x128xf32>
    %cst_62 = arith.constant dense<0.000000e+00> : vector<8x128xf32>
    %122 = tpu.matmul %120, %121, %cst_62 {dimension_numbers = #tpu.dot_dimension_numbers<[1], [0], [0], [1], [0, 0, 1, 1], [], []>} : vector<8x128xf32>, vector<128x128xf32>, vector<8x128xf32> -> vector<8x128xf32>
    %123 = arith.addf %122, %6 : vector<8x128xf32>
    %cst_63 = arith.constant dense<0xFF800000> : vector<8xf32>
    %124 = vector.multi_reduction <maximumf>, %123, %cst_63 [1] : vector<8x128xf32> to vector<8xf32>
    %125 = vector.shape_cast %124 : vector<8xf32> to vector<8x1xf32>
    %126 = vector.broadcast %125 : vector<8x1xf32> to vector<8x128xf32>
    %127 = arith.subf %123, %126 : vector<8x128xf32>
    %128 = math.exp %127 : vector<8x128xf32>
    %cst_64 = arith.constant dense<0.000000e+00> : vector<8xf32>
    %129 = vector.multi_reduction <add>, %128, %cst_64 [1] : vector<8x128xf32> to vector<8xf32>
    %130 = vector.shape_cast %129 : vector<8xf32> to vector<8x1xf32>
    %131 = math.log %130 : vector<8x1xf32>
    %132 = arith.addf %125, %131 : vector<8x1xf32>
    %133 = vector.broadcast %132 : vector<8x1xf32> to vector<8x128xf32>
    %134 = arith.subf %123, %133 : vector<8x128xf32>
    %135 = arith.index_cast %c0_i32 : i32 to index
    %c0_65 = arith.constant 0 : index
    %c0_66 = arith.constant 0 : index
    %136 = vector.load %arg15[%135, %c0_65, %c0_66] : memref<1x8x128xf32, #tpu.memory_space<vmem>>, vector<1x8x128xf32>
    %137 = vector.shape_cast %136 : vector<1x8x128xf32> to vector<8x128xf32>
    %138 = vector.shape_cast %134 : vector<8x128xf32> to vector<1x8x128xf32>
    tpu.vector_store %arg15[%135, %c0_65, %c0_66], %138 {strides = array<i32>} : memref<1x8x128xf32, #tpu.memory_space<vmem>>, vector<1x8x128xf32>,
    %139 = arith.index_cast %c0_i32 : i32 to index
    %c0_67 = arith.constant 0 : index
    %c0_68 = arith.constant 0 : index
    %140 = vector.load %arg16[%139, %c0_67, %c0_68] : memref<1x8x256xf32, #tpu.memory_space<vmem>>, vector<1x8x128xf32>
    %141 = vector.shape_cast %140 : vector<1x8x128xf32> to vector<8x128xf32>
    %142 = vector.shape_cast %50 : vector<8x128xf32> to vector<1x8x128xf32>
    tpu.vector_store %arg16[%139, %c0_67, %c0_68], %142 {strides = array<i32>} : memref<1x8x256xf32, #tpu.memory_space<vmem>>, vector<1x8x128xf32>,
    %143 = arith.index_cast %c0_i32 : i32 to index
    %c0_69 = arith.constant 0 : index
    %c128_70 = arith.constant 128 : index
    %144 = vector.load %arg16[%143, %c0_69, %c128_70] : memref<1x8x256xf32, #tpu.memory_space<vmem>>, vector<1x8x128xf32>
    %145 = vector.shape_cast %144 : vector<1x8x128xf32> to vector<8x128xf32>
    %146 = vector.shape_cast %120 : vector<8x128xf32> to vector<1x8x128xf32>
    tpu.vector_store %arg16[%143, %c0_69, %c128_70], %146 {strides = array<i32>} : memref<1x8x256xf32, #tpu.memory_space<vmem>>, vector<1x8x128xf32>,
    %147 = arith.index_cast %c0_i32 : i32 to index
    %c0_71 = arith.constant 0 : index
    %c0_72 = arith.constant 0 : index
    %148 = vector.load %arg17[%147, %c0_71, %c0_72] : memref<1x8x128xf32, #tpu.memory_space<vmem>>, vector<1x8x16xf32>
    %149 = vector.shape_cast %148 : vector<1x8x16xf32> to vector<8x16xf32>
    %150 = vector.shape_cast %80 : vector<8x16xf32> to vector<1x8x16xf32>
    tpu.vector_store %arg17[%147, %c0_71, %c0_72], %150 {strides = array<i32>} : memref<1x8x128xf32, #tpu.memory_space<vmem>>, vector<1x8x16xf32>,
    %c0_73 = arith.constant 0 : index
    %c0_74 = arith.constant 0 : index
    %151 = vector.load %arg18[%c0_73, %c0_74] : memref<8x128xf32, #tpu.memory_space<vmem>>, vector<8x128xf32>
    tpu.vector_store %arg18[%c0_73, %c0_74], %50 {strides = array<i32>} : memref<8x128xf32, #tpu.memory_space<vmem>>, vector<8x128xf32>,
    %c0_75 = arith.constant 0 : index
    %c128_76 = arith.constant 128 : index
    %152 = vector.load %arg19[%c0_75, %c128_76] : memref<8x256xf32, #tpu.memory_space<vmem>>, vector<8x128xf32>
    tpu.vector_store %arg19[%c0_75, %c128_76], %120 {strides = array<i32>} : memref<8x256xf32, #tpu.memory_space<vmem>>, vector<8x128xf32>,
    %c1_i32 = arith.constant 1 : i32
    return
  }
  func.func @transform_0(%arg0: i32) -> (i32, i32, i32) {
    %c0_i32 = arith.constant 0 : i32
    %c0_i32_0 = arith.constant 0 : i32
    %c0_i32_1 = arith.constant 0 : i32
    %c0_i32_2 = arith.constant 0 : i32
    return %c0_i32, %c0_i32_0, %c0_i32_1 : i32, i32, i32
  }
  func.func @transform_1(%arg0: i32) -> (i32, i32) {
    %c0_i32 = arith.constant 0 : i32
    %c0_i32_0 = arith.constant 0 : i32
    %c0_i32_1 = arith.constant 0 : i32
    return %c0_i32, %c0_i32_0 : i32, i32
  }
  func.func @transform_2(%arg0: i32) -> (i32, i32) {
    %c0_i32 = arith.constant 0 : i32
    %c0_i32_0 = arith.constant 0 : i32
    %c0_i32_1 = arith.constant 0 : i32
    return %c0_i32, %c0_i32_0 : i32, i32
  }
  func.func @transform_3(%arg0: i32) -> (i32, i32, i32) {
    %c0_i32 = arith.constant 0 : i32
    %c0_i32_0 = arith.constant 0 : i32
    %c0_i32_1 = arith.constant 0 : i32
    %c0_i32_2 = arith.constant 0 : i32
    return %c0_i32, %c0_i32_0, %c0_i32_1 : i32, i32, i32
  }
  func.func @transform_4(%arg0: i32) -> (i32, i32, i32) {
    %c0_i32 = arith.constant 0 : i32
    %c0_i32_0 = arith.constant 0 : i32
    %c0_i32_1 = arith.constant 0 : i32
    %c0_i32_2 = arith.constant 0 : i32
    return %c0_i32, %c0_i32_0, %c0_i32_1 : i32, i32, i32
  }
  func.func @transform_5(%arg0: i32) -> (i32, i32, i32) {
    %c0_i32 = arith.constant 0 : i32
    %c0_i32_0 = arith.constant 0 : i32
    %c0_i32_1 = arith.constant 0 : i32
    %c0_i32_2 = arith.constant 0 : i32
    return %c0_i32, %c0_i32_0, %c0_i32_1 : i32, i32, i32
  }
  func.func @transform_6(%arg0: i32) -> (i32, i32, i32) {
    %c0_i32 = arith.constant 0 : i32
    %c0_i32_0 = arith.constant 0 : i32
    %c0_i32_1 = arith.constant 0 : i32
    %c0_i32_2 = arith.constant 0 : i32
    return %c0_i32, %c0_i32_0, %c0_i32_1 : i32, i32, i32
  }
  func.func @transform_7(%arg0: i32) -> (i32, i32) {
    %c0_i32 = arith.constant 0 : i32
    %c0_i32_0 = arith.constant 0 : i32
    %c0_i32_1 = arith.constant 0 : i32
    return %c0_i32, %c0_i32_0 : i32, i32
  }
  func.func @transform_8(%arg0: i32) -> (i32, i32) {
    %c0_i32 = arith.constant 0 : i32
    %c0_i32_0 = arith.constant 0 : i32
    %c0_i32_1 = arith.constant 0 : i32
    return %c0_i32, %c0_i32_0 : i32, i32
  }
  func.func @transform_9(%arg0: i32) -> (i32, i32) {
    %c0_i32 = arith.constant 0 : i32
    %c0_i32_0 = arith.constant 0 : i32
    %c0_i32_1 = arith.constant 0 : i32
    return %c0_i32, %c0_i32_0 : i32, i32
  }
  func.func @transform_10(%arg0: i32) -> (i32, i32) {
    %c0_i32 = arith.constant 0 : i32
    %c0_i32_0 = arith.constant 0 : i32
    %c0_i32_1 = arith.constant 0 : i32
    return %c0_i32, %c0_i32_0 : i32, i32
  }
  func.func @transform_11(%arg0: i32) -> (i32, i32) {
    %c0_i32 = arith.constant 0 : i32
    %c0_i32_0 = arith.constant 0 : i32
    %c0_i32_1 = arith.constant 0 : i32
    return %c0_i32, %c0_i32_0 : i32, i32
  }
  func.func @transform_12(%arg0: i32) -> (i32, i32) {
    %c0_i32 = arith.constant 0 : i32
    %c0_i32_0 = arith.constant 0 : i32
    %c0_i32_1 = arith.constant 0 : i32
    return %c0_i32, %c0_i32_0 : i32, i32
  }
  func.func @transform_13(%arg0: i32) -> (i32, i32) {
    %c0_i32 = arith.constant 0 : i32
    %c0_i32_0 = arith.constant 0 : i32
    %c0_i32_1 = arith.constant 0 : i32
    return %c0_i32, %c0_i32_0 : i32, i32
  }
  func.func @transform_14(%arg0: i32) -> (i32, i32, i32) {
    %c0_i32 = arith.constant 0 : i32
    %c0_i32_0 = arith.constant 0 : i32
    %c0_i32_1 = arith.constant 0 : i32
    %c0_i32_2 = arith.constant 0 : i32
    return %c0_i32, %c0_i32_0, %c0_i32_1 : i32, i32, i32
  }
  func.func @transform_15(%arg0: i32) -> (i32, i32, i32) {
    %c0_i32 = arith.constant 0 : i32
    %c0_i32_0 = arith.constant 0 : i32
    %c0_i32_1 = arith.constant 0 : i32
    %c0_i32_2 = arith.constant 0 : i32
    return %c0_i32, %c0_i32_0, %c0_i32_1 : i32, i32, i32
  }
  func.func @transform_16(%arg0: i32) -> (i32, i32, i32) {
    %c0_i32 = arith.constant 0 : i32
    %c0_i32_0 = arith.constant 0 : i32
    %c0_i32_1 = arith.constant 0 : i32
    %c0_i32_2 = arith.constant 0 : i32
    return %c0_i32, %c0_i32_0, %c0_i32_1 : i32, i32, i32
  }
}

</mosaic_0001>

<llo_original>
// kernel: decode_sequence.1
$region0: #{decode_sequence.1}
  #allocation0 [shape = 'u32[]', space=smem, size = 0x4, offset = 0x4, fixed_abs, tag = 'smem constant byte address 0x4 - core index']
  #allocation1 [shape = 'u32[72,128]{1,0:T(1,128)}', space=vmem, size = 0x9000, scoped, tag = 'internal scratch']
  #allocation2 [shape = 'f32[8,128]{1,0:T(8,128)}', space=vmem, size = 0x1000, scoped, tag = 'scratch operand']
  #allocation3 [shape = 'f32[8,256]{1,0:T(8,128)}', space=vmem, size = 0x2000, scoped, tag = 'scratch operand']
  %s0 = inlined_call_operand.vmem [shape: f32[1,8,128], index: 0, kind: input, shape index: {}]
  %s1 = inlined_call_operand.vmem [shape: f32[8,128], index: 1, kind: input, shape index: {}]
  %s2 = inlined_call_operand.vmem [shape: f32[8,128], index: 2, kind: input, shape index: {}]
  %s3 = inlined_call_operand.vmem [shape: f32[8,16,24], index: 3, kind: input, shape index: {}]
  %s4 = inlined_call_operand.vmem [shape: f32[8,8,32], index: 4, kind: input, shape index: {}]
  %s5 = inlined_call_operand.vmem [shape: f32[8,16,128], index: 5, kind: input, shape index: {}]
  %s6 = inlined_call_operand.vmem [shape: f32[8,8,128], index: 6, kind: input, shape index: {}]
  %s7 = inlined_call_operand.hbm [shape: f32[256,384], index: 7, kind: input, shape index: {}]
  %s8 = inlined_call_operand.vmem [shape: f32[128,384], index: 8, kind: input, shape index: {}]
  %s9 = inlined_call_operand.hbm [shape: f32[128,384], index: 9, kind: input, shape index: {}]
  %s10 = inlined_call_operand.vmem [shape: f32[24,128], index: 10, kind: input, shape index: {}]
  %s11 = inlined_call_operand.vmem [shape: f32[32,128], index: 11, kind: input, shape index: {}]
  %s12 = inlined_call_operand.vmem [shape: f32[128,128], index: 12, kind: input, shape index: {}]
  %s13 = inlined_call_operand.vmem [shape: f32[8,1536], index: 13, kind: input, shape index: {}]
  %s14 = inlined_call_operand.vmem [shape: f32[1,8,128], index: 14, kind: output, shape index: {0}]
  %s15 = inlined_call_operand.vmem [shape: f32[1,8,256], index: 15, kind: output, shape index: {1}]
  %s16 = inlined_call_operand.vmem [shape: f32[1,8,128], index: 16, kind: output, shape index: {2}]
  %17 = xla_tuple %s14, %s15, %s16
  %s18 = sld [smem:[#allocation0]]
  $region90: #{decode_sequence.1} parent=0
    _
  %s20 = ssub.s32 1, %s18
  %s21 = scalar_select 0, %s20, %s18
  $region1: #{decode_sequence.1} parent=0
    #allocation4 [shape = 'u8[393216]{0}', space=vmem, size = 0x60000, scoped, tag = 'input window, operand 7, single buffered']
    #allocation5 [shape = 's32[1]{0}', space=sflag, size = 0x4, scoped, tag = 'scoped memory for decode_sequence.1']
    #allocation6 [shape = 'u8[196608]{0}', space=vmem, size = 0x30000, scoped, tag = 'input window, operand 9, single buffered']
    #allocation7 [shape = 's32[1]{0}', space=sflag, size = 0x4, scoped, tag = 'scoped memory for decode_sequence.1']
    %22 = vsyncpa [#allocation5], 0
    %23 = vsyncpa [#allocation7], 0
    // Predicated region
    $region2: #{decode_sequence.1} parent=1 // pred_check
      _
    $region3: #{decode_sequence.1} parent=1 // pred_check_branch
      %25 = sbr.rel (0) target = $region5
    $region4: #{decode_sequence.1} parent=1 // pred_region
      _
    $region5: #{decode_sequence.1} parent=1 // pred_fallthru
      _
    // Predicated region
    $region6: #{decode_sequence.1} parent=1 // pred_check
      _
    $region7: #{decode_sequence.1} parent=1 // pred_check_branch
      %27 = sbr.rel (0) target = $region9
    $region8: #{decode_sequence.1} parent=1 // pred_region
      _
    $region9: #{decode_sequence.1} parent=1 // pred_fallthru
      _
    // Predicated region
    $region10: #{decode_sequence.1} parent=1 // pred_check
      _
    $region11: #{decode_sequence.1} parent=1 // pred_check_branch
      %29 = sbr.rel (0) target = $region13
    $region12: #{decode_sequence.1} parent=1 // pred_region
      _
    $region13: #{decode_sequence.1} parent=1 // pred_fallthru
      _
    // Predicated region
    $region14: #{decode_sequence.1} parent=1 // pred_check
      _
    $region15: #{decode_sequence.1} parent=1 // pred_check_branch
      %31 = sbr.rel (0) target = $region17
    $region16: #{decode_sequence.1} parent=1 // pred_region
      _
    $region17: #{decode_sequence.1} parent=1 // pred_fallthru
      _
    // Predicated region
    $region18: #{decode_sequence.1} parent=1 // pred_check
      _
    $region19: #{decode_sequence.1} parent=1 // pred_check_branch
      %33 = sbr.rel (0) target = $region21
    $region20: #{decode_sequence.1} parent=1 // pred_region
      _
    $region21: #{decode_sequence.1} parent=1 // pred_fallthru
      _
    // Predicated region
    $region22: #{decode_sequence.1} parent=1 // pred_check
      _
    $region23: #{decode_sequence.1} parent=1 // pred_check_branch
      %35 = sbr.rel (0) target = $region25
    $region24: #{decode_sequence.1} parent=1 // pred_region
      _
    $region25: #{decode_sequence.1} parent=1 // pred_fallthru
      _
    // Predicated region
    $region26: #{decode_sequence.1} parent=1 // pred_check
      _
    $region27: #{decode_sequence.1} parent=1 // pred_check_branch
      %37 = sbr.rel (0) target = $region29
    $region28: #{decode_sequence.1} parent=1 // pred_region
      _
    $region29: #{decode_sequence.1} parent=1 // pred_fallthru
      _
    // Predicated region
    $region30: #{decode_sequence.1} parent=1 // pred_check
      _
    $region31: #{decode_sequence.1} parent=1 // pred_check_branch
      %39 = sbr.rel (0) target = $region33
    $region32: #{decode_sequence.1} parent=1 // pred_region
      %41 = vsyncadd [#allocation5], 0
      %s42 = sshll.u32 %s7, 4
      %s43 = int_to_ptr.hbm [resolvable:$true] %s42
      %s44 = sshll.u32 [#allocation4], 4
      %s45 = int_to_ptr.vmem [resolvable:$true] %s44
      %50 = dma.hbm_to_vmem [thread:$0]  %s43, 12288, %s45, [#allocation5], 384, 384, 24
    $region33: #{decode_sequence.1} parent=1 // pred_fallthru
      _
    // Predicated region
    $region34: #{decode_sequence.1} parent=1 // pred_check
      _
    $region35: #{decode_sequence.1} parent=1 // pred_check_branch
      %52 = sbr.rel (0) target = $region37
    $region36: #{decode_sequence.1} parent=1 // pred_region
      _
    $region37: #{decode_sequence.1} parent=1 // pred_fallthru
      _
    // Predicated region
    $region38: #{decode_sequence.1} parent=1 // pred_check
      _
    $region39: #{decode_sequence.1} parent=1 // pred_check_branch
      %54 = sbr.rel (0) target = $region41
    $region40: #{decode_sequence.1} parent=1 // pred_region
      %56 = vsyncadd [#allocation7], 0
      %s57 = sshll.u32 %s9, 4
      %s58 = int_to_ptr.hbm [resolvable:$true] %s57
      %s59 = sshll.u32 [#allocation6], 4
      %s60 = int_to_ptr.vmem [resolvable:$true] %s59
      %65 = dma.hbm_to_vmem [thread:$0]  %s58, 6144, %s60, [#allocation7], 384, 384, 24
    $region41: #{decode_sequence.1} parent=1 // pred_fallthru
      _
    // Predicated region
    $region42: #{decode_sequence.1} parent=1 // pred_check
      _
    $region43: #{decode_sequence.1} parent=1 // pred_check_branch
      %67 = sbr.rel (0) target = $region45
    $region44: #{decode_sequence.1} parent=1 // pred_region
      _
    $region45: #{decode_sequence.1} parent=1 // pred_fallthru
      _
    // Predicated region
    $region46: #{decode_sequence.1} parent=1 // pred_check
      _
    $region47: #{decode_sequence.1} parent=1 // pred_check_branch
      %69 = sbr.rel (0) target = $region49
    $region48: #{decode_sequence.1} parent=1 // pred_region
      _
    $region49: #{decode_sequence.1} parent=1 // pred_fallthru
      _
    // Predicated region
    $region50: #{decode_sequence.1} parent=1 // pred_check
      _
    $region51: #{decode_sequence.1} parent=1 // pred_check_branch
      %71 = sbr.rel (0) target = $region53
    $region52: #{decode_sequence.1} parent=1 // pred_region
      _
    $region53: #{decode_sequence.1} parent=1 // pred_fallthru
      _
    // Predicated region
    $region54: #{decode_sequence.1} parent=1 // pred_check
      _
    $region55: #{decode_sequence.1} parent=1 // pred_check_branch
      %73 = sbr.rel (0) target = $region57
    $region56: #{decode_sequence.1} parent=1 // pred_region
      _
    $region57: #{decode_sequence.1} parent=1 // pred_fallthru
      _
    // Predicated region
    $region58: #{decode_sequence.1} parent=1 // pred_check
      _
    $region59: #{decode_sequence.1} parent=1 // pred_check_branch
      %75 = sbr.rel (0) target = $region61
    $region60: #{decode_sequence.1} parent=1 // pred_region
      %77 = dma.done [#allocation5], 12288
    $region61: #{decode_sequence.1} parent=1 // pred_fallthru
      _
    // Predicated region
    $region62: #{decode_sequence.1} parent=1 // pred_check
      _
    $region63: #{decode_sequence.1} parent=1 // pred_check_branch
      %79 = sbr.rel (0) target = $region65
    $region64: #{decode_sequence.1} parent=1 // pred_region
      %81 = dma.done [#allocation7], 6144
    $region65: #{decode_sequence.1} parent=1 // pred_fallthru
      _
    %v82 = vld [vmem:[%s13] sm:$0xff]
    %v83 = vld [vmem:[%s13 + $0x8] sm:$0xff]
    %v84 = vld [vmem:[%s13 + $0x10] sm:$0xff]
    %v85 = vld [vmem:[%s13 + $0x18] sm:$0xff]
    %v86 = vld [vmem:[%s13 + $0x20] sm:$0xff]
    %v87 = vld [vmem:[%s13 + $0x28] sm:$0xff]
    %v88 = vld [vmem:[%s13 + $0x30] sm:$0xff]
    %v89 = vld [vmem:[%s13 + $0x38] sm:$0xff]
    %v90 = vld [vmem:[%s13 + $0x40] sm:$0xff]
    %v91 = vld [vmem:[%s13 + $0x48] sm:$0xff]
    %v92 = vld [vmem:[%s13 + $0x50] sm:$0xff]
    %v93 = vld [vmem:[%s13 + $0x58] sm:$0xff]
    %v94 = vld [vmem:[%s1] sm:$0xff]
    %95 = vst [vmem:[#allocation2] sm:$0xff] %v94
    %v96 = vld [vmem:[%s2] sm:$0xff]
    %97 = vst [vmem:[#allocation3 + $0x8] sm:$0xff] %v96
    %98 = vst [vmem:[%s16] sm:$0xff] 0.0
    %v99 = vld [vmem:[%s0] sm:$0xff]
    %100 = vst [vmem:[#allocation3] sm:$0xff] %v99
    %v101 = vld [vmem:[#allocation3] sm:$0xff]
    %v102 = vld [vmem:[#allocation3 + $0x8] sm:$0xff]
    %v103 = vld [vmem:[#allocation2] sm:$0xff]
    %v104 = vld [vmem:[#allocation4] sm:$0xff]
    %v105 = vld [vmem:[#allocation4 + $0x8] sm:$0xff]
    %v106 = vld [vmem:[#allocation4 + $0x10] sm:$0xff]
    %v107 = vld [vmem:[#allocation4 + $0x18] sm:$0xff]
    %v108 = vld [vmem:[#allocation4 + $0x20] sm:$0xff]
    %v109 = vld [vmem:[#allocation4 + $0x28] sm:$0xff]
    %v110 = vld [vmem:[#allocation4 + $0x30] sm:$0xff]
    %v111 = vld [vmem:[#allocation4 + $0x38] sm:$0xff]
    %v112 = vld [vmem:[#allocation4 + $0x40] sm:$0xff]
    %v113 = vld [vmem:[#allocation4 + $0x48] sm:$0xff]
    %v114 = vld [vmem:[#allocation4 + $0x50] sm:$0xff]
    %v115 = vld [vmem:[#allocation4 + $0x58] sm:$0xff]
    %v116 = vld [vmem:[#allocation4 + $0x60] sm:$0xff]
    %v117 = vld [vmem:[#allocation4 + $0x68] sm:$0xff]
    %v118 = vld [vmem:[#allocation4 + $0x70] sm:$0xff]
    %v119 = vld [vmem:[#allocation4 + $0x78] sm:$0xff]
    %v120 = vld [vmem:[#allocation4 + $0x80] sm:$0xff]
    %v121 = vld [vmem:[#allocation4 + $0x88] sm:$0xff]
    %v122 = vld [vmem:[#allocation4 + $0x90] sm:$0xff]
    %v123 = vld [vmem:[#allocation4 + $0x98] sm:$0xff]
    %v124 = vld [vmem:[#allocation4 + $0xa0] sm:$0xff]
    %v125 = vld [vmem:[#allocation4 + $0xa8] sm:$0xff]
    %v126 = vld [vmem:[#allocation4 + $0xb0] sm:$0xff]
    %v127 = vld [vmem:[#allocation4 + $0xb8] sm:$0xff]
    %v128 = vld [vmem:[#allocation4 + $0xc0] sm:$0xff]
    %v129 = vld [vmem:[#allocation4 + $0xc8] sm:$0xff]
    %v130 = vld [vmem:[#allocation4 + $0xd0] sm:$0xff]
    %v131 = vld [vmem:[#allocation4 + $0xd8] sm:$0xff]
    %v132 = vld [vmem:[#allocation4 + $0xe0] sm:$0xff]
    %v133 = vld [vmem:[#allocation4 + $0xe8] sm:$0xff]
    %v134 = vld [vmem:[#allocation4 + $0xf0] sm:$0xff]
    %v135 = vld [vmem:[#allocation4 + $0xf8] sm:$0xff]
    %v136 = vld [vmem:[#allocation4 + $0x100] sm:$0xff]
    %v137 = vld [vmem:[#allocation4 + $0x108] sm:$0xff]
    %v138 = vld [vmem:[#allocation4 + $0x110] sm:$0xff]
    %v139 = vld [vmem:[#allocation4 + $0x118] sm:$0xff]
    %v140 = vld [vmem:[#allocation4 + $0x120] sm:$0xff]
    %v141 = vld [vmem:[#allocation4 + $0x128] sm:$0xff]
    %v142 = vld [vmem:[#allocation4 + $0x130] sm:$0xff]
    %v143 = vld [vmem:[#allocation4 + $0x138] sm:$0xff]
    %v144 = vld [vmem:[#allocation4 + $0x140] sm:$0xff]
    %v145 = vld [vmem:[#allocation4 + $0x148] sm:$0xff]
    %v146 = vld [vmem:[#allocation4 + $0x150] sm:$0xff]
    %v147 = vld [vmem:[#allocation4 + $0x158] sm:$0xff]
    %v148 = vld [vmem:[#allocation4 + $0x160] sm:$0xff]
    %v149 = vld [vmem:[#allocation4 + $0x168] sm:$0xff]
    %v150 = vld [vmem:[#allocation4 + $0x170] sm:$0xff]
    %v151 = vld [vmem:[#allocation4 + $0x178] sm:$0xff]
    %v152 = vld [vmem:[#allocation4 + $0x180] sm:$0xff]
    %v153 = vld [vmem:[#allocation4 + $0x188] sm:$0xff]
    %v154 = vld [vmem:[#allocation4 + $0x190] sm:$0xff]
    %v155 = vld [vmem:[#allocation4 + $0x198] sm:$0xff]
    %v156 = vld [vmem:[#allocation4 + $0x1a0] sm:$0xff]
    %v157 = vld [vmem:[#allocation4 + $0x1a8] sm:$0xff]
    %v158 = vld [vmem:[#allocation4 + $0x1b0] sm:$0xff]
    %v159 = vld [vmem:[#allocation4 + $0x1b8] sm:$0xff]
    %v160 = vld [vmem:[#allocation4 + $0x1c0] sm:$0xff]
    %v161 = vld [vmem:[#allocation4 + $0x1c8] sm:$0xff]
    %v162 = vld [vmem:[#allocation4 + $0x1d0] sm:$0xff]
    %v163 = vld [vmem:[#allocation4 + $0x1d8] sm:$0xff]
    %v164 = vld [vmem:[#allocation4 + $0x1e0] sm:$0xff]
    %v165 = vld [vmem:[#allocation4 + $0x1e8] sm:$0xff]
    %v166 = vld [vmem:[#allocation4 + $0x1f0] sm:$0xff]
    %v167 = vld [vmem:[#allocation4 + $0x1f8] sm:$0xff]
    %v168 = vld [vmem:[#allocation4 + $0x200] sm:$0xff]
    %v169 = vld [vmem:[#allocation4 + $0x208] sm:$0xff]
    %v170 = vld [vmem:[#allocation4 + $0x210] sm:$0xff]
    %v171 = vld [vmem:[#allocation4 + $0x218] sm:$0xff]
    %v172 = vld [vmem:[#allocation4 + $0x220] sm:$0xff]
    %v173 = vld [vmem:[#allocation4 + $0x228] sm:$0xff]
    %v174 = vld [vmem:[#allocation4 + $0x230] sm:$0xff]
    %v175 = vld [vmem:[#allocation4 + $0x238] sm:$0xff]
    %v176 = vld [vmem:[#allocation4 + $0x240] sm:$0xff]
    %v177 = vld [vmem:[#allocation4 + $0x248] sm:$0xff]
    %v178 = vld [vmem:[#allocation4 + $0x250] sm:$0xff]
    %v179 = vld [vmem:[#allocation4 + $0x258] sm:$0xff]
    %v180 = vld [vmem:[#allocation4 + $0x260] sm:$0xff]
    %v181 = vld [vmem:[#allocation4 + $0x268] sm:$0xff]
    %v182 = vld [vmem:[#allocation4 + $0x270] sm:$0xff]
    %v183 = vld [vmem:[#allocation4 + $0x278] sm:$0xff]
    %v184 = vld [vmem:[#allocation4 + $0x280] sm:$0xff]
    %v185 = vld [vmem:[#allocation4 + $0x288] sm:$0xff]
    %v186 = vld [vmem:[#allocation4 + $0x290] sm:$0xff]
    %v187 = vld [vmem:[#allocation4 + $0x298] sm:$0xff]
    %v188 = vld [vmem:[#allocation4 + $0x2a0] sm:$0xff]
    %v189 = vld [vmem:[#allocation4 + $0x2a8] sm:$0xff]
    %v190 = vld [vmem:[#allocation4 + $0x2b0] sm:$0xff]
    %v191 = vld [vmem:[#allocation4 + $0x2b8] sm:$0xff]
    %v192 = vld [vmem:[#allocation4 + $0x2c0] sm:$0xff]
    %v193 = vld [vmem:[#allocation4 + $0x2c8] sm:$0xff]
    %v194 = vld [vmem:[#allocation4 + $0x2d0] sm:$0xff]
    %v195 = vld [vmem:[#allocation4 + $0x2d8] sm:$0xff]
    %v196 = vld [vmem:[#allocation4 + $0x2e0] sm:$0xff]
    %v197 = vld [vmem:[#allocation4 + $0x2e8] sm:$0xff]
    %v198 = vld [vmem:[#allocation4 + $0x2f0] sm:$0xff]
    %v199 = vld [vmem:[#allocation4 + $0x2f8] sm:$0xff]
    %200 = vmatpush.msra.mxu0 %v149
    %201 = vmatpush.msra.mxu0 %v146
    %202 = vmatpush.msra.mxu0 %v143
    %203 = vmatpush.msra.mxu0 %v140
    %204 = vmatpush.msra.mxu0 %v137
    %205 = vmatpush.msra.mxu0 %v134
    %206 = vmatpush.msra.mxu0 %v131
    %207 = vmatpush.msra.mxu0 %v128
    %208 = vmatpush.msra.mxu0 %v125
    %209 = vmatpush.msra.mxu0 %v122
    %210 = vmatpush.msra.mxu0 %v119
    %211 = vmatpush.msra.mxu0 %v116
    %212 = vmatpush.msra.mxu0 %v113
    %213 = vmatpush.msra.mxu0 %v110
    %214 = vmatpush.msra.mxu0 %v107
    %215 = vmatpush.msra.mxu0 %v104
    %216 = vmatmul.f32.gmra.mxu0 %v101
    %v217 = vpop.f32.mrf.mxu0
    %v218 = vadd.f32 %v82, %v217
    %219 = vdwg.mxu0
    %220 = vmatpush.msra.mxu0 %v197
    %221 = vmatpush.msra.mxu0 %v194
    %222 = vmatpush.msra.mxu0 %v191
    %223 = vmatpush.msra.mxu0 %v188
    %224 = vmatpush.msra.mxu0 %v185
    %225 = vmatpush.msra.mxu0 %v182
    %226 = vmatpush.msra.mxu0 %v179
    %227 = vmatpush.msra.mxu0 %v176
    %228 = vmatpush.msra.mxu0 %v173
    %229 = vmatpush.msra.mxu0 %v170
    %230 = vmatpush.msra.mxu0 %v167
    %231 = vmatpush.msra.mxu0 %v164
    %232 = vmatpush.msra.mxu0 %v161
    %233 = vmatpush.msra.mxu0 %v158
    %234 = vmatpush.msra.mxu0 %v155
    %235 = vmatpush.msra.mxu0 %v152
    %236 = vmatmul.f32.gmra.mxu0 %v102
    %v237 = vpop.f32.mrf.mxu0
    %v238 = vadd.f32 %v218, %v237
    %239 = vdwg.mxu0
    %240 = vmatpush.msra.mxu0 %v150
    %241 = vmatpush.msra.mxu0 %v147
    %242 = vmatpush.msra.mxu0 %v144
    %243 = vmatpush.msra.mxu0 %v141
    %244 = vmatpush.msra.mxu0 %v138
    %245 = vmatpush.msra.mxu0 %v135
    %246 = vmatpush.msra.mxu0 %v132
    %247 = vmatpush.msra.mxu0 %v129
    %248 = vmatpush.msra.mxu0 %v126
    %249 = vmatpush.msra.mxu0 %v123
    %250 = vmatpush.msra.mxu0 %v120
    %251 = vmatpush.msra.mxu0 %v117
    %252 = vmatpush.msra.mxu0 %v114
    %253 = vmatpush.msra.mxu0 %v111
    %254 = vmatpush.msra.mxu0 %v108
    %255 = vmatpush.msra.mxu0 %v105
    %256 = vmatmul.f32.gmra.mxu0 %v101
    %v257 = vpop.f32.mrf.mxu0
    %v258 = vadd.f32 %v83, %v257
    %259 = vdwg.mxu0
    %260 = vmatpush.msra.mxu0 %v198
    %261 = vmatpush.msra.mxu0 %v195
    %262 = vmatpush.msra.mxu0 %v192
    %263 = vmatpush.msra.mxu0 %v189
    %264 = vmatpush.msra.mxu0 %v186
    %265 = vmatpush.msra.mxu0 %v183
    %266 = vmatpush.msra.mxu0 %v180
    %267 = vmatpush.msra.mxu0 %v177
    %268 = vmatpush.msra.mxu0 %v174
    %269 = vmatpush.msra.mxu0 %v171
    %270 = vmatpush.msra.mxu0 %v168
    %271 = vmatpush.msra.mxu0 %v165
    %272 = vmatpush.msra.mxu0 %v162
    %273 = vmatpush.msra.mxu0 %v159
    %274 = vmatpush.msra.mxu0 %v156
    %275 = vmatpush.msra.mxu0 %v153
    %276 = vmatmul.f32.gmra.mxu0 %v102
    %v277 = vpop.f32.mrf.mxu0
    %v278 = vadd.f32 %v258, %v277
    %279 = vdwg.mxu0
    %280 = vmatpush.msra.mxu0 %v151
    %281 = vmatpush.msra.mxu0 %v148
    %282 = vmatpush.msra.mxu0 %v145
    %283 = vmatpush.msra.mxu0 %v142
    %284 = vmatpush.msra.mxu0 %v139
    %285 = vmatpush.msra.mxu0 %v136
    %286 = vmatpush.msra.mxu0 %v133
    %287 = vmatpush.msra.mxu0 %v130
    %288 = vmatpush.msra.mxu0 %v127
    %289 = vmatpush.msra.mxu0 %v124
    %290 = vmatpush.msra.mxu0 %v121
    %291 = vmatpush.msra.mxu0 %v118
    %292 = vmatpush.msra.mxu0 %v115
    %293 = vmatpush.msra.mxu0 %v112
    %294 = vmatpush.msra.mxu0 %v109
    %295 = vmatpush.msra.mxu0 %v106
    %296 = vmatmul.f32.gmra.mxu0 %v101
    %v297 = vpop.f32.mrf.mxu0
    %v298 = vadd.f32 %v84, %v297
    %299 = vdwg.mxu0
    %300 = vmatpush.msra.mxu0 %v199
    %301 = vmatpush.msra.mxu0 %v196
    %302 = vmatpush.msra.mxu0 %v193
    %303 = vmatpush.msra.mxu0 %v190
    %304 = vmatpush.msra.mxu0 %v187
    %305 = vmatpush.msra.mxu0 %v184
    %306 = vmatpush.msra.mxu0 %v181
    %307 = vmatpush.msra.mxu0 %v178
    %308 = vmatpush.msra.mxu0 %v175
    %309 = vmatpush.msra.mxu0 %v172
    %310 = vmatpush.msra.mxu0 %v169
    %311 = vmatpush.msra.mxu0 %v166
    %312 = vmatpush.msra.mxu0 %v163
    %313 = vmatpush.msra.mxu0 %v160
    %314 = vmatpush.msra.mxu0 %v157
    %315 = vmatpush.msra.mxu0 %v154
    %316 = vmatmul.f32.gmra.mxu0 %v102
    %v317 = vpop.f32.mrf.mxu0
    %v318 = vadd.f32 %v298, %v317
    %319 = vdwg.mxu0
    %v320 = vld [vmem:[%s8] sm:$0xff]
    %v321 = vld [vmem:[%s8 + $0x8] sm:$0xff]
    %v322 = vld [vmem:[%s8 + $0x10] sm:$0xff]
    %v323 = vld [vmem:[%s8 + $0x18] sm:$0xff]
    %v324 = vld [vmem:[%s8 + $0x20] sm:$0xff]
    %v325 = vld [vmem:[%s8 + $0x28] sm:$0xff]
    %v326 = vld [vmem:[%s8 + $0x30] sm:$0xff]
    %v327 = vld [vmem:[%s8 + $0x38] sm:$0xff]
    %v328 = vld [vmem:[%s8 + $0x40] sm:$0xff]
    %v329 = vld [vmem:[%s8 + $0x48] sm:$0xff]
    %v330 = vld [vmem:[%s8 + $0x50] sm:$0xff]
    %v331 = vld [vmem:[%s8 + $0x58] sm:$0xff]
    %v332 = vld [vmem:[%s8 + $0x60] sm:$0xff]
    %v333 = vld [vmem:[%s8 + $0x68] sm:$0xff]
    %v334 = vld [vmem:[%s8 + $0x70] sm:$0xff]
    %v335 = vld [vmem:[%s8 + $0x78] sm:$0xff]
    %v336 = vld [vmem:[%s8 + $0x80] sm:$0xff]
    %v337 = vld [vmem:[%s8 + $0x88] sm:$0xff]
    %v338 = vld [vmem:[%s8 + $0x90] sm:$0xff]
    %v339 = vld [vmem:[%s8 + $0x98] sm:$0xff]
    %v340 = vld [vmem:[%s8 + $0xa0] sm:$0xff]
    %v341 = vld [vmem:[%s8 + $0xa8] sm:$0xff]
    %v342 = vld [vmem:[%s8 + $0xb0] sm:$0xff]
    %v343 = vld [vmem:[%s8 + $0xb8] sm:$0xff]
    %v344 = vld [vmem:[%s8 + $0xc0] sm:$0xff]
    %v345 = vld [vmem:[%s8 + $0xc8] sm:$0xff]
    %v346 = vld [vmem:[%s8 + $0xd0] sm:$0xff]
    %v347 = vld [vmem:[%s8 + $0xd8] sm:$0xff]
    %v348 = vld [vmem:[%s8 + $0xe0] sm:$0xff]
    %v349 = vld [vmem:[%s8 + $0xe8] sm:$0xff]
    %v350 = vld [vmem:[%s8 + $0xf0] sm:$0xff]
    %v351 = vld [vmem:[%s8 + $0xf8] sm:$0xff]
    %v352 = vld [vmem:[%s8 + $0x100] sm:$0xff]
    %v353 = vld [vmem:[%s8 + $0x108] sm:$0xff]
    %v354 = vld [vmem:[%s8 + $0x110] sm:$0xff]
    %v355 = vld [vmem:[%s8 + $0x118] sm:$0xff]
    %v356 = vld [vmem:[%s8 + $0x120] sm:$0xff]
    %v357 = vld [vmem:[%s8 + $0x128] sm:$0xff]
    %v358 = vld [vmem:[%s8 + $0x130] sm:$0xff]
    %v359 = vld [vmem:[%s8 + $0x138] sm:$0xff]
    %v360 = vld [vmem:[%s8 + $0x140] sm:$0xff]
    %v361 = vld [vmem:[%s8 + $0x148] sm:$0xff]
    %v362 = vld [vmem:[%s8 + $0x150] sm:$0xff]
    %v363 = vld [vmem:[%s8 + $0x158] sm:$0xff]
    %v364 = vld [vmem:[%s8 + $0x160] sm:$0xff]
    %v365 = vld [vmem:[%s8 + $0x168] sm:$0xff]
    %v366 = vld [vmem:[%s8 + $0x170] sm:$0xff]
    %v367 = vld [vmem:[%s8 + $0x178] sm:$0xff]
    %368 = vmatpush.msra.mxu0 %v365
    %369 = vmatpush.msra.mxu0 %v362
    %370 = vmatpush.msra.mxu0 %v359
    %371 = vmatpush.msra.mxu0 %v356
    %372 = vmatpush.msra.mxu0 %v353
    %373 = vmatpush.msra.mxu0 %v350
    %374 = vmatpush.msra.mxu0 %v347
    %375 = vmatpush.msra.mxu0 %v344
    %376 = vmatpush.msra.mxu0 %v341
    %377 = vmatpush.msra.mxu0 %v338
    %378 = vmatpush.msra.mxu0 %v335
    %379 = vmatpush.msra.mxu0 %v332
    %380 = vmatpush.msra.mxu0 %v329
    %381 = vmatpush.msra.mxu0 %v326
    %382 = vmatpush.msra.mxu0 %v323
    %383 = vmatpush.msra.mxu0 %v320
    %384 = vmatmul.f32.gmra.mxu0 %v103
    %v385 = vpop.f32.mrf.mxu0
    %v386 = vadd.f32 %v85, %v385
    %387 = vdwg.mxu0
    %388 = vmatpush.msra.mxu0 %v366
    %389 = vmatpush.msra.mxu0 %v363
    %390 = vmatpush.msra.mxu0 %v360
    %391 = vmatpush.msra.mxu0 %v357
    %392 = vmatpush.msra.mxu0 %v354
    %393 = vmatpush.msra.mxu0 %v351
    %394 = vmatpush.msra.mxu0 %v348
    %395 = vmatpush.msra.mxu0 %v345
    %396 = vmatpush.msra.mxu0 %v342
    %397 = vmatpush.msra.mxu0 %v339
    %398 = vmatpush.msra.mxu0 %v336
    %399 = vmatpush.msra.mxu0 %v333
    %400 = vmatpush.msra.mxu0 %v330
    %401 = vmatpush.msra.mxu0 %v327
    %402 = vmatpush.msra.mxu0 %v324
    %403 = vmatpush.msra.mxu0 %v321
    %404 = vmatmul.f32.gmra.mxu0 %v103
    %v405 = vpop.f32.mrf.mxu0
    %v406 = vadd.f32 %v86, %v405
    %407 = vdwg.mxu0
    %408 = vmatpush.msra.mxu0 %v367
    %409 = vmatpush.msra.mxu0 %v364
    %410 = vmatpush.msra.mxu0 %v361
    %411 = vmatpush.msra.mxu0 %v358
    %412 = vmatpush.msra.mxu0 %v355
    %413 = vmatpush.msra.mxu0 %v352
    %414 = vmatpush.msra.mxu0 %v349
    %415 = vmatpush.msra.mxu0 %v346
    %416 = vmatpush.msra.mxu0 %v343
    %417 = vmatpush.msra.mxu0 %v340
    %418 = vmatpush.msra.mxu0 %v337
    %419 = vmatpush.msra.mxu0 %v334
    %420 = vmatpush.msra.mxu0 %v331
    %421 = vmatpush.msra.mxu0 %v328
    %422 = vmatpush.msra.mxu0 %v325
    %423 = vmatpush.msra.mxu0 %v322
    %424 = vmatmul.f32.gmra.mxu0 %v103
    %v425 = vpop.f32.mrf.mxu0
    %v426 = vadd.f32 %v87, %v425
    %427 = vdwg.mxu0
    %v428 = vadd.f32 %v238, %v386
    %v429 = vxor.u32 %v428, 2147483648
    %v430 = vmul.f32 %v429, 1.442695
    %v431 = vpow.pop %v430
    %v432 = vadd.f32 %v431, 1.0
    %v433 = vrcp.pop %v432
    %v434 = vmul.f32 %v432, %v433
    %v435 = vsub.f32 1.0, %v434
    %v436 = vmul.f32 %v433, %v435
    %v437 = vadd.f32 %v433, %v436
    %vm438 = vweird.f32 %v432
    %vm439 = vweird.f32 %v433
    %vm440 = vmor %vm438, %vm439
    %v441 = vsel %vm440, %v433, %v437
    %v442 = vand.u32 2147483647, %v432
    %vm443 = vcmp.eq.f32.partialorder %v442, 8.507059e+37
    %v444 = vand.u32 %v432, 2147483648
    %v445 = vor.u32 1.1754944e-38, %v444
    %v446 = vsel %vm443, %v445, %v441
    %v447 = vmul.f32 1.0, %v446
    %v448 = vadd.f32 %v278, %v406
    %v449 = vxor.u32 %v448, 2147483648
    %v450 = vmul.f32 %v449, 1.442695
    %v451 = vpow.pop %v450
    %v452 = vadd.f32 %v451, 1.0
    %v453 = vrcp.pop %v452
    %v454 = vmul.f32 %v452, %v453
    %v455 = vsub.f32 1.0, %v454
    %v456 = vmul.f32 %v453, %v455
    %v457 = vadd.f32 %v453, %v456
    %vm458 = vweird.f32 %v452
    %vm459 = vweird.f32 %v453
    %vm460 = vmor %vm458, %vm459
    %v461 = vsel %vm460, %v453, %v457
    %v462 = vand.u32 2147483647, %v452
    %vm463 = vcmp.eq.f32.partialorder %v462, 8.507059e+37
    %v464 = vand.u32 %v452, 2147483648
    %v465 = vor.u32 1.1754944e-38, %v464
    %v466 = vsel %vm463, %v465, %v461
    %v467 = vmul.f32 1.0, %v466
    %v468 = vmul.f32 %v447, %v426
    %v469 = vadd.f32 %v318, %v468
    %v470 = vtanh.pop %v469
    %v471 = vsub.f32 1.0, %v467
    %v472 = vmul.f32 %v471, %v470
    %v473 = vmul.f32 %v467, %v103
    %v474 = vadd.f32 %v472, %v473
    %v475 = vld [vmem:[#allocation6] sm:$0xff]
    %v476 = vld [vmem:[#allocation6 + $0x8] sm:$0xff]
    %v477 = vld [vmem:[#allocation6 + $0x10] sm:$0xff]
    %v478 = vld [vmem:[#allocation6 + $0x18] sm:$0xff]
    %v479 = vld [vmem:[#allocation6 + $0x20] sm:$0xff]
    %v480 = vld [vmem:[#allocation6 + $0x28] sm:$0xff]
    %v481 = vld [vmem:[#allocation6 + $0x30] sm:$0xff]
    %v482 = vld [vmem:[#allocation6 + $0x38] sm:$0xff]
    %v483 = vld [vmem:[#allocation6 + $0x40] sm:$0xff]
    %v484 = vld [vmem:[#allocation6 + $0x48] sm:$0xff]
    %v485 = vld [vmem:[#allocation6 + $0x50] sm:$0xff]
    %v486 = vld [vmem:[#allocation6 + $0x58] sm:$0xff]
    %v487 = vld [vmem:[#allocation6 + $0x60] sm:$0xff]
    %v488 = vld [vmem:[#allocation6 + $0x68] sm:$0xff]
    %v489 = vld [vmem:[#allocation6 + $0x70] sm:$0xff]
    %v490 = vld [vmem:[#allocation6 + $0x78] sm:$0xff]
    %v491 = vld [vmem:[#allocation6 + $0x80] sm:$0xff]
    %v492 = vld [vmem:[#allocation6 + $0x88] sm:$0xff]
    %v493 = vld [vmem:[#allocation6 + $0x90] sm:$0xff]
    %v494 = vld [vmem:[#allocation6 + $0x98] sm:$0xff]
    %v495 = vld [vmem:[#allocation6 + $0xa0] sm:$0xff]
    %v496 = vld [vmem:[#allocation6 + $0xa8] sm:$0xff]
    %v497 = vld [vmem:[#allocation6 + $0xb0] sm:$0xff]
    %v498 = vld [vmem:[#allocation6 + $0xb8] sm:$0xff]
    %v499 = vld [vmem:[#allocation6 + $0xc0] sm:$0xff]
    %v500 = vld [vmem:[#allocation6 + $0xc8] sm:$0xff]
    %v501 = vld [vmem:[#allocation6 + $0xd0] sm:$0xff]
    %v502 = vld [vmem:[#allocation6 + $0xd8] sm:$0xff]
    %v503 = vld [vmem:[#allocation6 + $0xe0] sm:$0xff]
    %v504 = vld [vmem:[#allocation6 + $0xe8] sm:$0xff]
    %v505 = vld [vmem:[#allocation6 + $0xf0] sm:$0xff]
    %v506 = vld [vmem:[#allocation6 + $0xf8] sm:$0xff]
    %v507 = vld [vmem:[#allocation6 + $0x100] sm:$0xff]
    %v508 = vld [vmem:[#allocation6 + $0x108] sm:$0xff]
    %v509 = vld [vmem:[#allocation6 + $0x110] sm:$0xff]
    %v510 = vld [vmem:[#allocation6 + $0x118] sm:$0xff]
    %v511 = vld [vmem:[#allocation6 + $0x120] sm:$0xff]
    %v512 = vld [vmem:[#allocation6 + $0x128] sm:$0xff]
    %v513 = vld [vmem:[#allocation6 + $0x130] sm:$0xff]
    %v514 = vld [vmem:[#allocation6 + $0x138] sm:$0xff]
    %v515 = vld [vmem:[#allocation6 + $0x140] sm:$0xff]
    %v516 = vld [vmem:[#allocation6 + $0x148] sm:$0xff]
    %v517 = vld [vmem:[#allocation6 + $0x150] sm:$0xff]
    %v518 = vld [vmem:[#allocation6 + $0x158] sm:$0xff]
    %v519 = vld [vmem:[#allocation6 + $0x160] sm:$0xff]
    %v520 = vld [vmem:[#allocation6 + $0x168] sm:$0xff]
    %v521 = vld [vmem:[#allocation6 + $0x170] sm:$0xff]
    %v522 = vld [vmem:[#allocation6 + $0x178] sm:$0xff]
    %523 = vmatpush.msra.mxu0 %v520
    %524 = vmatpush.msra.mxu0 %v517
    %525 = vmatpush.msra.mxu0 %v514
    %526 = vmatpush.msra.mxu0 %v511
    %527 = vmatpush.msra.mxu0 %v508
    %528 = vmatpush.msra.mxu0 %v505
    %529 = vmatpush.msra.mxu0 %v502
    %530 = vmatpush.msra.mxu0 %v499
    %531 = vmatpush.msra.mxu0 %v496
    %532 = vmatpush.msra.mxu0 %v493
    %533 = vmatpush.msra.mxu0 %v490
    %534 = vmatpush.msra.mxu0 %v487
    %535 = vmatpush.msra.mxu0 %v484
    %536 = vmatpush.msra.mxu0 %v481
    %537 = vmatpush.msra.mxu0 %v478
    %538 = vmatpush.msra.mxu0 %v475
    %539 = vmatmul.f32.gmra.mxu0 %v474
    %v540 = vpop.f32.mrf.mxu0
    %v541 = vadd.f32 %v88, %v540
    %542 = vdwg.mxu0
    %543 = vmatpush.msra.mxu0 %v521
    %544 = vmatpush.msra.mxu0 %v518
    %545 = vmatpush.msra.mxu0 %v515
    %546 = vmatpush.msra.mxu0 %v512
    %547 = vmatpush.msra.mxu0 %v509
    %548 = vmatpush.msra.mxu0 %v506
    %549 = vmatpush.msra.mxu0 %v503
    %550 = vmatpush.msra.mxu0 %v500
    %551 = vmatpush.msra.mxu0 %v497
    %552 = vmatpush.msra.mxu0 %v494
    %553 = vmatpush.msra.mxu0 %v491
    %554 = vmatpush.msra.mxu0 %v488
    %555 = vmatpush.msra.mxu0 %v485
    %556 = vmatpush.msra.mxu0 %v482
    %557 = vmatpush.msra.mxu0 %v479
    %558 = vmatpush.msra.mxu0 %v476
    %559 = vmatmul.f32.gmra.mxu0 %v474
    %v560 = vpop.f32.mrf.mxu0
    %v561 = vadd.f32 %v89, %v560
    %562 = vdwg.mxu0
    %563 = vmatpush.msra.mxu0 %v522
    %564 = vmatpush.msra.mxu0 %v519
    %565 = vmatpush.msra.mxu0 %v516
    %566 = vmatpush.msra.mxu0 %v513
    %567 = vmatpush.msra.mxu0 %v510
    %568 = vmatpush.msra.mxu0 %v507
    %569 = vmatpush.msra.mxu0 %v504
    %570 = vmatpush.msra.mxu0 %v501
    %571 = vmatpush.msra.mxu0 %v498
    %572 = vmatpush.msra.mxu0 %v495
    %573 = vmatpush.msra.mxu0 %v492
    %574 = vmatpush.msra.mxu0 %v489
    %575 = vmatpush.msra.mxu0 %v486
    %576 = vmatpush.msra.mxu0 %v483
    %577 = vmatpush.msra.mxu0 %v480
    %578 = vmatpush.msra.mxu0 %v477
    %579 = vmatmul.f32.gmra.mxu0 %v474
    %v580 = vpop.f32.mrf.mxu0
    %v581 = vadd.f32 %v90, %v580
    %582 = vdwg.mxu0
    %v583 = vld [vmem:[%s5] sm:$0xff]
    %v584 = vld [vmem:[%s5 + $0x8] sm:$0xff]
    %v585 = vld [vmem:[%s5 + $0x10] sm:$0xff]
    %v586 = vld [vmem:[%s5 + $0x18] sm:$0xff]
    %v587 = vld [vmem:[%s5 + $0x20] sm:$0xff]
    %v588 = vld [vmem:[%s5 + $0x28] sm:$0xff]
    %v589 = vld [vmem:[%s5 + $0x30] sm:$0xff]
    %v590 = vld [vmem:[%s5 + $0x38] sm:$0xff]
    %v591 = vld [vmem:[%s5 + $0x40] sm:$0xff]
    %v592 = vld [vmem:[%s5 + $0x48] sm:$0xff]
    %v593 = vld [vmem:[%s5 + $0x50] sm:$0xff]
    %v594 = vld [vmem:[%s5 + $0x58] sm:$0xff]
    %v595 = vld [vmem:[%s5 + $0x60] sm:$0xff]
    %v596 = vld [vmem:[%s5 + $0x68] sm:$0xff]
    %v597 = vld [vmem:[%s5 + $0x70] sm:$0xff]
    %v598 = vld [vmem:[%s5 + $0x78] sm:$0xff]
    %v599 = vld [vmem:[%s3] sm:$0xff]
    %v600 = vld [vmem:[%s3 + $0x8] sm:$0xff]
    %v601 = vld [vmem:[%s3 + $0x10] sm:$0xff]
    %v602 = vld [vmem:[%s3 + $0x18] sm:$0xff]
    %v603 = vld [vmem:[%s3 + $0x20] sm:$0xff]
    %v604 = vld [vmem:[%s3 + $0x28] sm:$0xff]
    %v605 = vld [vmem:[%s3 + $0x30] sm:$0xff]
    %v606 = vld [vmem:[%s3 + $0x38] sm:$0xff]
    %v607 = vld [vmem:[%s3 + $0x40] sm:$0xff]
    %v608 = vld [vmem:[%s3 + $0x48] sm:$0xff]
    %v609 = vld [vmem:[%s3 + $0x50] sm:$0xff]
    %v610 = vld [vmem:[%s3 + $0x58] sm:$0xff]
    %v611 = vld [vmem:[%s3 + $0x60] sm:$0xff]
    %v612 = vld [vmem:[%s3 + $0x68] sm:$0xff]
    %v613 = vld [vmem:[%s3 + $0x70] sm:$0xff]
    %v614 = vld [vmem:[%s3 + $0x78] sm:$0xff]
    %v616 = vrot.slane %v541, 1
    %v617 = vrot.slane %v541, 2
    %v618 = vrot.slane %v541, 3
    %v619 = vrot.slane %v541, 4
    %v620 = vrot.slane %v541, 5
    %v621 = vrot.slane %v541, 6
    %v622 = vrot.slane %v541, 7
    %v623 = vperm.slane %v541, 0
    %v624 = vperm.slane %v616, 0
    %v625 = vperm.slane %v617, 0
    %v626 = vperm.slane %v618, 0
    %v627 = vperm.slane %v619, 0
    %v628 = vperm.slane %v620, 0
    %v629 = vperm.slane %v621, 0
    %v630 = vperm.slane %v622, 0
    %v639 = vadd.f32 %v623, %v583
    %v640 = vadd.f32 %v623, %v584
    %v641 = vadd.f32 %v624, %v585
    %v642 = vadd.f32 %v624, %v586
    %v643 = vadd.f32 %v625, %v587
    %v644 = vadd.f32 %v625, %v588
    %v645 = vadd.f32 %v626, %v589
    %v646 = vadd.f32 %v626, %v590
    %v647 = vadd.f32 %v627, %v591
    %v648 = vadd.f32 %v627, %v592
    %v649 = vadd.f32 %v628, %v593
    %v650 = vadd.f32 %v628, %v594
    %v651 = vadd.f32 %v629, %v595
    %v652 = vadd.f32 %v629, %v596
    %v653 = vadd.f32 %v630, %v597
    %v654 = vadd.f32 %v630, %v598
    %v655 = vtanh.pop %v639
    %v656 = vtanh.pop %v640
    %v657 = vtanh.pop %v641
    %v658 = vtanh.pop %v642
    %v659 = vtanh.pop %v643
    %v660 = vtanh.pop %v644
    %v661 = vtanh.pop %v645
    %v662 = vtanh.pop %v646
    %v663 = vtanh.pop %v647
    %v664 = vtanh.pop %v648
    %v665 = vtanh.pop %v649
    %v666 = vtanh.pop %v650
    %v667 = vtanh.pop %v651
    %v668 = vtanh.pop %v652
    %v669 = vtanh.pop %v653
    %v670 = vtanh.pop %v654
    %v672 = vrot.slane %v91, 1
    %v673 = vrot.slane %v91, 2
    %v674 = vrot.slane %v91, 3
    %v675 = vrot.slane %v91, 4
    %v676 = vrot.slane %v91, 5
    %v677 = vrot.slane %v91, 6
    %v678 = vrot.slane %v91, 7
    %v679 = vperm.slane %v91, 0
    %v680 = vperm.slane %v672, 0
    %v681 = vperm.slane %v673, 0
    %v682 = vperm.slane %v674, 0
    %v683 = vperm.slane %v675, 0
    %v684 = vperm.slane %v676, 0
    %v685 = vperm.slane %v677, 0
    %v686 = vperm.slane %v678, 0
    %v695 = vmul.f32 %v655, %v679
    %v696 = vmul.f32 %v656, %v679
    %v697 = vmul.f32 %v657, %v680
    %v698 = vmul.f32 %v658, %v680
    %v699 = vmul.f32 %v659, %v681
    %v700 = vmul.f32 %v660, %v681
    %v701 = vmul.f32 %v661, %v682
    %v702 = vmul.f32 %v662, %v682
    %v703 = vmul.f32 %v663, %v683
    %v704 = vmul.f32 %v664, %v683
    %v705 = vmul.f32 %v665, %v684
    %v706 = vmul.f32 %v666, %v684
    %v707 = vmul.f32 %v667, %v685
    %v708 = vmul.f32 %v668, %v685
    %v709 = vmul.f32 %v669, %v686
    %v710 = vmul.f32 %v670, %v686
    %711 = vadd.xlane.f32.xlu0 %v695
    %v712 = vpop.xlane.xlu0 %711
    %713 = vadd.xlane.f32.xlu0 %v696
    %v714 = vpop.xlane.xlu0 %713
    %715 = vadd.xlane.f32.xlu0 %v697
    %v716 = vpop.xlane.xlu0 %715
    %717 = vadd.xlane.f32.xlu0 %v698
    %v718 = vpop.xlane.xlu0 %717
    %719 = vadd.xlane.f32.xlu0 %v699
    %v720 = vpop.xlane.xlu0 %719
    %721 = vadd.xlane.f32.xlu0 %v700
    %v722 = vpop.xlane.xlu0 %721
    %723 = vadd.xlane.f32.xlu0 %v701
    %v724 = vpop.xlane.xlu0 %723
    %725 = vadd.xlane.f32.xlu0 %v702
    %v726 = vpop.xlane.xlu0 %725
    %727 = vadd.xlane.f32.xlu0 %v703
    %v728 = vpop.xlane.xlu0 %727
    %729 = vadd.xlane.f32.xlu0 %v704
    %v730 = vpop.xlane.xlu0 %729
    %731 = vadd.xlane.f32.xlu0 %v705
    %v732 = vpop.xlane.xlu0 %731
    %733 = vadd.xlane.f32.xlu0 %v706
    %v734 = vpop.xlane.xlu0 %733
    %735 = vadd.xlane.f32.xlu0 %v707
    %v736 = vpop.xlane.xlu0 %735
    %737 = vadd.xlane.f32.xlu0 %v708
    %v738 = vpop.xlane.xlu0 %737
    %739 = vadd.xlane.f32.xlu0 %v709
    %v740 = vpop.xlane.xlu0 %739
    %741 = vadd.xlane.f32.xlu0 %v710
    %v742 = vpop.xlane.xlu0 %741
    %v743 = vlaneseq
    %v744 = vand.u32 %v743, 127
    %vm745 = vcmp.lt.s32.totalorder %v744, 10
    %v762 = vperm.slane %v712, %v744
    %v763 = vadd.s32 %v744, 4294967288
    %v764 = vperm.slane %v714, %v763
    %vm765 = vcmask 130112
    %v766 = vsel %vm765, %v764, %v762
    %v767 = vperm.slane %v716, %v744
    %v768 = vperm.slane %v718, %v763
    %v769 = vsel %vm765, %v768, %v767
    %v770 = vperm.slane %v720, %v744
    %v771 = vperm.slane %v722, %v763
    %v772 = vsel %vm765, %v771, %v770
    %v773 = vperm.slane %v724, %v744
    %v774 = vperm.slane %v726, %v763
    %v775 = vsel %vm765, %v774, %v773
    %v776 = vperm.slane %v728, %v744
    %v777 = vperm.slane %v730, %v763
    %v778 = vsel %vm765, %v777, %v776
    %v779 = vperm.slane %v732, %v744
    %v780 = vperm.slane %v734, %v763
    %v781 = vsel %vm765, %v780, %v779
    %v782 = vperm.slane %v736, %v744
    %v783 = vperm.slane %v738, %v763
    %v784 = vsel %vm765, %v783, %v782
    %v785 = vperm.slane %v740, %v744
    %v786 = vperm.slane %v742, %v763
    %v787 = vsel %vm765, %v786, %v785
    %vm788 = vcmask 1041409
    %v789 = vsel %vm788, %v769, %v766
    %vm790 = vcmask 1042434
    %v791 = vsel %vm790, %v772, %v789
    %vm792 = vcmask 1043459
    %v793 = vsel %vm792, %v775, %v791
    %vm794 = vcmask 1044484
    %v795 = vsel %vm794, %v778, %v793
    %vm796 = vcmask 1045509
    %v797 = vsel %vm796, %v781, %v795
    %vm798 = vcmask 1046534
    %v799 = vsel %vm798, %v784, %v797
    %vm800 = vcmask 1047559
    %v801 = vsel %vm800, %v787, %v799
    %v803 = vsel %vm745, %v801, -1e+30
    %vm804 = vcmask 130048
    %v805 = vsel %vm804, %v803, -inf
    %806 = vmax.xlane.f32.xlu0 %v805
    %v807 = vpop.xlane.xlu0 %806
    %v808 = vsub.f32 %v803, %v807
    %v809 = vmul.f32 %v808, 1.442695
    %v810 = vpow.pop %v809
    %v811 = vsel %vm804, %v810, 0.0
    %812 = vadd.xlane.f32.xlu0 %v811
    %v813 = vpop.xlane.xlu0 %812
    %v814 = vrcp.pop %v813
    %v815 = vmul.f32 %v813, %v814
    %v816 = vsub.f32 1.0, %v815
    %v817 = vmul.f32 %v814, %v816
    %v818 = vadd.f32 %v814, %v817
    %vm819 = vweird.f32 %v813
    %vm820 = vweird.f32 %v814
    %vm821 = vmor %vm819, %vm820
    %v822 = vsel %vm821, %v814, %v818
    %v823 = vand.u32 2147483647, %v813
    %vm824 = vcmp.eq.f32.partialorder %v823, 8.507059e+37
    %v825 = vand.u32 %v813, 2147483648
    %v826 = vor.u32 1.1754944e-38, %v825
    %v827 = vsel %vm824, %v826, %v822
    %v828 = vmul.f32 %v810, %v827
    %v829 = vperm.slane %v828, 0
    %v830 = vlaneseq
    %v831 = vshrl.u32 %v830, 7
    %833 = vset.pattern.permute.xlu0 %v831
    %834 = vperm.xlu0 %833, %v829
    %v835 = vpop.permute.xlu0 %834
    %v836 = vlaneseq
    %v837 = vshrl.u32 %v836, 7
    %v838 = vadd.s32 %v837, 8
    %839 = vset.pattern.permute.xlu0 %v838
    %840 = vperm.xlu0 %839, %v829
    %v841 = vpop.permute.xlu0 %840
    %v842 = vperm.slane %v828, 1
    %v843 = vlaneseq
    %v844 = vshrl.u32 %v843, 7
    %846 = vset.pattern.permute.xlu0 %v844
    %847 = vperm.xlu0 %846, %v842
    %v848 = vpop.permute.xlu0 %847
    %v849 = vlaneseq
    %v850 = vshrl.u32 %v849, 7
    %v851 = vadd.s32 %v850, 8
    %852 = vset.pattern.permute.xlu0 %v851
    %853 = vperm.xlu0 %852, %v842
    %v854 = vpop.permute.xlu0 %853
    %v855 = vperm.slane %v828, 2
    %v856 = vlaneseq
    %v857 = vshrl.u32 %v856, 7
    %859 = vset.pattern.permute.xlu0 %v857
    %860 = vperm.xlu0 %859, %v855
    %v861 = vpop.permute.xlu0 %860
    %v862 = vlaneseq
    %v863 = vshrl.u32 %v862, 7
    %v864 = vadd.s32 %v863, 8
    %865 = vset.pattern.permute.xlu0 %v864
    %866 = vperm.xlu0 %865, %v855
    %v867 = vpop.permute.xlu0 %866
    %v868 = vperm.slane %v828, 3
    %v869 = vlaneseq
    %v870 = vshrl.u32 %v869, 7
    %872 = vset.pattern.permute.xlu0 %v870
    %873 = vperm.xlu0 %872, %v868
    %v874 = vpop.permute.xlu0 %873
    %v875 = vlaneseq
    %v876 = vshrl.u32 %v875, 7
    %v877 = vadd.s32 %v876, 8
    %878 = vset.pattern.permute.xlu0 %v877
    %879 = vperm.xlu0 %878, %v868
    %v880 = vpop.permute.xlu0 %879
    %v881 = vperm.slane %v828, 4
    %v882 = vlaneseq
    %v883 = vshrl.u32 %v882, 7
    %885 = vset.pattern.permute.xlu0 %v883
    %886 = vperm.xlu0 %885, %v881
    %v887 = vpop.permute.xlu0 %886
    %v888 = vlaneseq
    %v889 = vshrl.u32 %v888, 7
    %v890 = vadd.s32 %v889, 8
    %891 = vset.pattern.permute.xlu0 %v890
    %892 = vperm.xlu0 %891, %v881
    %v893 = vpop.permute.xlu0 %892
    %v894 = vperm.slane %v828, 5
    %v895 = vlaneseq
    %v896 = vshrl.u32 %v895, 7
    %898 = vset.pattern.permute.xlu0 %v896
    %899 = vperm.xlu0 %898, %v894
    %v900 = vpop.permute.xlu0 %899
    %v901 = vlaneseq
    %v902 = vshrl.u32 %v901, 7
    %v903 = vadd.s32 %v902, 8
    %904 = vset.pattern.permute.xlu0 %v903
    %905 = vperm.xlu0 %904, %v894
    %v906 = vpop.permute.xlu0 %905
    %v907 = vperm.slane %v828, 6
    %v908 = vlaneseq
    %v909 = vshrl.u32 %v908, 7
    %911 = vset.pattern.permute.xlu0 %v909
    %912 = vperm.xlu0 %911, %v907
    %v913 = vpop.permute.xlu0 %912
    %v914 = vlaneseq
    %v915 = vshrl.u32 %v914, 7
    %v916 = vadd.s32 %v915, 8
    %917 = vset.pattern.permute.xlu0 %v916
    %918 = vperm.xlu0 %917, %v907
    %v919 = vpop.permute.xlu0 %918
    %v920 = vperm.slane %v828, 7
    %v921 = vlaneseq
    %v922 = vshrl.u32 %v921, 7
    %924 = vset.pattern.permute.xlu0 %v922
    %925 = vperm.xlu0 %924, %v920
    %v926 = vpop.permute.xlu0 %925
    %v927 = vlaneseq
    %v928 = vshrl.u32 %v927, 7
    %v929 = vadd.s32 %v928, 8
    %930 = vset.pattern.permute.xlu0 %v929
    %931 = vperm.xlu0 %930, %v920
    %v932 = vpop.permute.xlu0 %931
    %v933 = vmul.f32 %v835, %v599
    %v934 = vmul.f32 %v841, %v600
    %v935 = vmul.f32 %v848, %v601
    %v936 = vmul.f32 %v854, %v602
    %v937 = vmul.f32 %v861, %v603
    %v938 = vmul.f32 %v867, %v604
    %v939 = vmul.f32 %v874, %v605
    %v940 = vmul.f32 %v880, %v606
    %v941 = vmul.f32 %v887, %v607
    %v942 = vmul.f32 %v893, %v608
    %v943 = vmul.f32 %v900, %v609
    %v944 = vmul.f32 %v906, %v610
    %v945 = vmul.f32 %v913, %v611
    %v946 = vmul.f32 %v919, %v612
    %v947 = vmul.f32 %v926, %v613
    %v948 = vmul.f32 %v932, %v614
    %vm949 = vcmask 195584
    %v950 = vsel %vm949, %v933, 0.0
    %v951 = vsel %vm949, %v934, 0.0
    %v952 = vadd.f32 %v950, %v951
    %v953 = vrot.slane %v952, 4
    %v954 = vadd.f32 %v952, %v953
    %v955 = vrot.slane %v954, 2
    %v956 = vadd.f32 %v954, %v955
    %v957 = vrot.slane %v956, 1
    %v958 = vadd.f32 %v956, %v957
    %v959 = vsel %vm949, %v935, 0.0
    %v960 = vsel %vm949, %v936, 0.0
    %v961 = vadd.f32 %v959, %v960
    %v962 = vrot.slane %v961, 4
    %v963 = vadd.f32 %v961, %v962
    %v964 = vrot.slane %v963, 2
    %v965 = vadd.f32 %v963, %v964
    %v966 = vrot.slane %v965, 1
    %v967 = vadd.f32 %v965, %v966
    %v968 = vsel %vm949, %v937, 0.0
    %v969 = vsel %vm949, %v938, 0.0
    %v970 = vadd.f32 %v968, %v969
    %v971 = vrot.slane %v970, 4
    %v972 = vadd.f32 %v970, %v971
    %v973 = vrot.slane %v972, 2
    %v974 = vadd.f32 %v972, %v973
    %v975 = vrot.slane %v974, 1
    %v976 = vadd.f32 %v974, %v975
    %v977 = vsel %vm949, %v939, 0.0
    %v978 = vsel %vm949, %v940, 0.0
    %v979 = vadd.f32 %v977, %v978
    %v980 = vrot.slane %v979, 4
    %v981 = vadd.f32 %v979, %v980
    %v982 = vrot.slane %v981, 2
    %v983 = vadd.f32 %v981, %v982
    %v984 = vrot.slane %v983, 1
    %v985 = vadd.f32 %v983, %v984
    %v986 = vsel %vm949, %v941, 0.0
    %v987 = vsel %vm949, %v942, 0.0
    %v988 = vadd.f32 %v986, %v987
    %v989 = vrot.slane %v988, 4
    %v990 = vadd.f32 %v988, %v989
    %v991 = vrot.slane %v990, 2
    %v992 = vadd.f32 %v990, %v991
    %v993 = vrot.slane %v992, 1
    %v994 = vadd.f32 %v992, %v993
    %v995 = vsel %vm949, %v943, 0.0
    %v996 = vsel %vm949, %v944, 0.0
    %v997 = vadd.f32 %v995, %v996
    %v998 = vrot.slane %v997, 4
    %v999 = vadd.f32 %v997, %v998
    %v1000 = vrot.slane %v999, 2
    %v1001 = vadd.f32 %v999, %v1000
    %v1002 = vrot.slane %v1001, 1
    %v1003 = vadd.f32 %v1001, %v1002
    %v1004 = vsel %vm949, %v945, 0.0
    %v1005 = vsel %vm949, %v946, 0.0
    %v1006 = vadd.f32 %v1004, %v1005
    %v1007 = vrot.slane %v1006, 4
    %v1008 = vadd.f32 %v1006, %v1007
    %v1009 = vrot.slane %v1008, 2
    %v1010 = vadd.f32 %v1008, %v1009
    %v1011 = vrot.slane %v1010, 1
    %v1012 = vadd.f32 %v1010, %v1011
    %v1013 = vsel %vm949, %v947, 0.0
    %v1014 = vsel %vm949, %v948, 0.0
    %v1015 = vadd.f32 %v1013, %v1014
    %v1016 = vrot.slane %v1015, 4
    %v1017 = vadd.f32 %v1015, %v1016
    %v1018 = vrot.slane %v1017, 2
    %v1019 = vadd.f32 %v1017, %v1018
    %v1020 = vrot.slane %v1019, 1
    %v1021 = vadd.f32 %v1019, %v1020
    %v1022 = vld [vmem:[%s6] sm:$0xff]
    %v1023 = vld [vmem:[%s6 + $0x8] sm:$0xff]
    %v1024 = vld [vmem:[%s6 + $0x10] sm:$0xff]
    %v1025 = vld [vmem:[%s6 + $0x18] sm:$0xff]
    %v1026 = vld [vmem:[%s6 + $0x20] sm:$0xff]
    %v1027 = vld [vmem:[%s6 + $0x28] sm:$0xff]
    %v1028 = vld [vmem:[%s6 + $0x30] sm:$0xff]
    %v1029 = vld [vmem:[%s6 + $0x38] sm:$0xff]
    %v1030 = vld [vmem:[%s4] sm:$0xff]
    %v1031 = vld [vmem:[%s4 + $0x8] sm:$0xff]
    %v1032 = vld [vmem:[%s4 + $0x10] sm:$0xff]
    %v1033 = vld [vmem:[%s4 + $0x18] sm:$0xff]
    %v1034 = vld [vmem:[%s4 + $0x20] sm:$0xff]
    %v1035 = vld [vmem:[%s4 + $0x28] sm:$0xff]
    %v1036 = vld [vmem:[%s4 + $0x30] sm:$0xff]
    %v1037 = vld [vmem:[%s4 + $0x38] sm:$0xff]
    %v1039 = vrot.slane %v561, 1
    %v1040 = vrot.slane %v561, 2
    %v1041 = vrot.slane %v561, 3
    %v1042 = vrot.slane %v561, 4
    %v1043 = vrot.slane %v561, 5
    %v1044 = vrot.slane %v561, 6
    %v1045 = vrot.slane %v561, 7
    %v1046 = vperm.slane %v561, 0
    %v1047 = vperm.slane %v1039, 0
    %v1048 = vperm.slane %v1040, 0
    %v1049 = vperm.slane %v1041, 0
    %v1050 = vperm.slane %v1042, 0
    %v1051 = vperm.slane %v1043, 0
    %v1052 = vperm.slane %v1044, 0
    %v1053 = vperm.slane %v1045, 0
    %v1062 = vadd.f32 %v1046, %v1022
    %v1063 = vadd.f32 %v1047, %v1023
    %v1064 = vadd.f32 %v1048, %v1024
    %v1065 = vadd.f32 %v1049, %v1025
    %v1066 = vadd.f32 %v1050, %v1026
    %v1067 = vadd.f32 %v1051, %v1027
    %v1068 = vadd.f32 %v1052, %v1028
    %v1069 = vadd.f32 %v1053, %v1029
    %v1070 = vtanh.pop %v1062
    %v1071 = vtanh.pop %v1063
    %v1072 = vtanh.pop %v1064
    %v1073 = vtanh.pop %v1065
    %v1074 = vtanh.pop %v1066
    %v1075 = vtanh.pop %v1067
    %v1076 = vtanh.pop %v1068
    %v1077 = vtanh.pop %v1069
    %v1079 = vrot.slane %v92, 1
    %v1080 = vrot.slane %v92, 2
    %v1081 = vrot.slane %v92, 3
    %v1082 = vrot.slane %v92, 4
    %v1083 = vrot.slane %v92, 5
    %v1084 = vrot.slane %v92, 6
    %v1085 = vrot.slane %v92, 7
    %v1086 = vperm.slane %v92, 0
    %v1087 = vperm.slane %v1079, 0
    %v1088 = vperm.slane %v1080, 0
    %v1089 = vperm.slane %v1081, 0
    %v1090 = vperm.slane %v1082, 0
    %v1091 = vperm.slane %v1083, 0
    %v1092 = vperm.slane %v1084, 0
    %v1093 = vperm.slane %v1085, 0
    %v1102 = vmul.f32 %v1070, %v1086
    %v1103 = vmul.f32 %v1071, %v1087
    %v1104 = vmul.f32 %v1072, %v1088
    %v1105 = vmul.f32 %v1073, %v1089
    %v1106 = vmul.f32 %v1074, %v1090
    %v1107 = vmul.f32 %v1075, %v1091
    %v1108 = vmul.f32 %v1076, %v1092
    %v1109 = vmul.f32 %v1077, %v1093
    %1110 = vadd.xlane.f32.xlu0 %v1102
    %v1111 = vpop.xlane.xlu0 %1110
    %1112 = vadd.xlane.f32.xlu0 %v1103
    %v1113 = vpop.xlane.xlu0 %1112
    %1114 = vadd.xlane.f32.xlu0 %v1104
    %v1115 = vpop.xlane.xlu0 %1114
    %1116 = vadd.xlane.f32.xlu0 %v1105
    %v1117 = vpop.xlane.xlu0 %1116
    %1118 = vadd.xlane.f32.xlu0 %v1106
    %v1119 = vpop.xlane.xlu0 %1118
    %1120 = vadd.xlane.f32.xlu0 %v1107
    %v1121 = vpop.xlane.xlu0 %1120
    %1122 = vadd.xlane.f32.xlu0 %v1108
    %v1123 = vpop.xlane.xlu0 %1122
    %1124 = vadd.xlane.f32.xlu0 %v1109
    %v1125 = vpop.xlane.xlu0 %1124
    %vm1126 = vcmp.lt.s32.totalorder %v744, 7
    %v1135 = vperm.slane %v1111, %v744
    %v1136 = vperm.slane %v1113, %v744
    %v1137 = vperm.slane %v1115, %v744
    %v1138 = vperm.slane %v1117, %v744
    %v1139 = vperm.slane %v1119, %v744
    %v1140 = vperm.slane %v1121, %v744
    %v1141 = vperm.slane %v1123, %v744
    %v1142 = vperm.slane %v1125, %v744
    %v1143 = vsel %vm788, %v1136, %v1135
    %v1144 = vsel %vm790, %v1137, %v1143
    %v1145 = vsel %vm792, %v1138, %v1144
    %v1146 = vsel %vm794, %v1139, %v1145
    %v1147 = vsel %vm796, %v1140, %v1146
    %v1148 = vsel %vm798, %v1141, %v1147
    %v1149 = vsel %vm800, %v1142, %v1148
    %v1151 = vsel %vm1126, %v1149, -1e+30
    %vm1152 = vcmask 64512
    %v1153 = vsel %vm1152, %v1151, -inf
    %1154 = vmax.xlane.f32.xlu0 %v1153
    %v1155 = vpop.xlane.xlu0 %1154
    %v1156 = vsub.f32 %v1151, %v1155
    %v1157 = vmul.f32 %v1156, 1.442695
    %v1158 = vpow.pop %v1157
    %v1159 = vsel %vm1152, %v1158, 0.0
    %1160 = vadd.xlane.f32.xlu0 %v1159
    %v1161 = vpop.xlane.xlu0 %1160
    %v1162 = vrcp.pop %v1161
    %v1163 = vmul.f32 %v1161, %v1162
    %v1164 = vsub.f32 1.0, %v1163
    %v1165 = vmul.f32 %v1162, %v1164
    %v1166 = vadd.f32 %v1162, %v1165
    %vm1167 = vweird.f32 %v1161
    %vm1168 = vweird.f32 %v1162
    %vm1169 = vmor %vm1167, %vm1168
    %v1170 = vsel %vm1169, %v1162, %v1166
    %v1171 = vand.u32 2147483647, %v1161
    %vm1172 = vcmp.eq.f32.partialorder %v1171, 8.507059e+37
    %v1173 = vand.u32 %v1161, 2147483648
    %v1174 = vor.u32 1.1754944e-38, %v1173
    %v1175 = vsel %vm1172, %v1174, %v1170
    %v1176 = vmul.f32 %v1158, %v1175
    %v1177 = vperm.slane %v1176, 0
    %v1178 = vlaneseq
    %v1179 = vshrl.u32 %v1178, 7
    %1181 = vset.pattern.permute.xlu0 %v1179
    %1182 = vperm.xlu0 %1181, %v1177
    %v1183 = vpop.permute.xlu0 %1182
    %v1184 = vperm.slane %v1176, 1
    %v1185 = vlaneseq
    %v1186 = vshrl.u32 %v1185, 7
    %1188 = vset.pattern.permute.xlu0 %v1186
    %1189 = vperm.xlu0 %1188, %v1184
    %v1190 = vpop.permute.xlu0 %1189
    %v1191 = vperm.slane %v1176, 2
    %v1192 = vlaneseq
    %v1193 = vshrl.u32 %v1192, 7
    %1195 = vset.pattern.permute.xlu0 %v1193
    %1196 = vperm.xlu0 %1195, %v1191
    %v1197 = vpop.permute.xlu0 %1196
    %v1198 = vperm.slane %v1176, 3
    %v1199 = vlaneseq
    %v1200 = vshrl.u32 %v1199, 7
    %1202 = vset.pattern.permute.xlu0 %v1200
    %1203 = vperm.xlu0 %1202, %v1198
    %v1204 = vpop.permute.xlu0 %1203
    %v1205 = vperm.slane %v1176, 4
    %v1206 = vlaneseq
    %v1207 = vshrl.u32 %v1206, 7
    %1209 = vset.pattern.permute.xlu0 %v1207
    %1210 = vperm.xlu0 %1209, %v1205
    %v1211 = vpop.permute.xlu0 %1210
    %v1212 = vperm.slane %v1176, 5
    %v1213 = vlaneseq
    %v1214 = vshrl.u32 %v1213, 7
    %1216 = vset.pattern.permute.xlu0 %v1214
    %1217 = vperm.xlu0 %1216, %v1212
    %v1218 = vpop.permute.xlu0 %1217
    %v1219 = vperm.slane %v1176, 6
    %v1220 = vlaneseq
    %v1221 = vshrl.u32 %v1220, 7
    %1223 = vset.pattern.permute.xlu0 %v1221
    %1224 = vperm.xlu0 %1223, %v1219
    %v1225 = vpop.permute.xlu0 %1224
    %v1226 = vperm.slane %v1176, 7
    %v1227 = vlaneseq
    %v1228 = vshrl.u32 %v1227, 7
    %1230 = vset.pattern.permute.xlu0 %v1228
    %1231 = vperm.xlu0 %1230, %v1226
    %v1232 = vpop.permute.xlu0 %1231
    %v1233 = vmul.f32 %v1183, %v1030
    %v1234 = vmul.f32 %v1190, %v1031
    %v1235 = vmul.f32 %v1197, %v1032
    %v1236 = vmul.f32 %v1204, %v1033
    %v1237 = vmul.f32 %v1211, %v1034
    %v1238 = vmul.f32 %v1218, %v1035
    %v1239 = vmul.f32 %v1225, %v1036
    %v1240 = vmul.f32 %v1232, %v1037
    %vm1241 = vcmask 261120
    %v1242 = vsel %vm1241, %v1233, 0.0
    %v1243 = vrot.slane %v1242, 4
    %v1244 = vadd.f32 %v1242, %v1243
    %v1245 = vrot.slane %v1244, 2
    %v1246 = vadd.f32 %v1244, %v1245
    %v1247 = vrot.slane %v1246, 1
    %v1248 = vadd.f32 %v1246, %v1247
    %v1249 = vsel %vm1241, %v1234, 0.0
    %v1250 = vrot.slane %v1249, 4
    %v1251 = vadd.f32 %v1249, %v1250
    %v1252 = vrot.slane %v1251, 2
    %v1253 = vadd.f32 %v1251, %v1252
    %v1254 = vrot.slane %v1253, 1
    %v1255 = vadd.f32 %v1253, %v1254
    %v1256 = vsel %vm1241, %v1235, 0.0
    %v1257 = vrot.slane %v1256, 4
    %v1258 = vadd.f32 %v1256, %v1257
    %v1259 = vrot.slane %v1258, 2
    %v1260 = vadd.f32 %v1258, %v1259
    %v1261 = vrot.slane %v1260, 1
    %v1262 = vadd.f32 %v1260, %v1261
    %v1263 = vsel %vm1241, %v1236, 0.0
    %v1264 = vrot.slane %v1263, 4
    %v1265 = vadd.f32 %v1263, %v1264
    %v1266 = vrot.slane %v1265, 2
    %v1267 = vadd.f32 %v1265, %v1266
    %v1268 = vrot.slane %v1267, 1
    %v1269 = vadd.f32 %v1267, %v1268
    %v1270 = vsel %vm1241, %v1237, 0.0
    %v1271 = vrot.slane %v1270, 4
    %v1272 = vadd.f32 %v1270, %v1271
    %v1273 = vrot.slane %v1272, 2
    %v1274 = vadd.f32 %v1272, %v1273
    %v1275 = vrot.slane %v1274, 1
    %v1276 = vadd.f32 %v1274, %v1275
    %v1277 = vsel %vm1241, %v1238, 0.0
    %v1278 = vrot.slane %v1277, 4
    %v1279 = vadd.f32 %v1277, %v1278
    %v1280 = vrot.slane %v1279, 2
    %v1281 = vadd.f32 %v1279, %v1280
    %v1282 = vrot.slane %v1281, 1
    %v1283 = vadd.f32 %v1281, %v1282
    %v1284 = vsel %vm1241, %v1239, 0.0
    %v1285 = vrot.slane %v1284, 4
    %v1286 = vadd.f32 %v1284, %v1285
    %v1287 = vrot.slane %v1286, 2
    %v1288 = vadd.f32 %v1286, %v1287
    %v1289 = vrot.slane %v1288, 1
    %v1290 = vadd.f32 %v1288, %v1289
    %v1291 = vsel %vm1241, %v1240, 0.0
    %v1292 = vrot.slane %v1291, 4
    %v1293 = vadd.f32 %v1291, %v1292
    %v1294 = vrot.slane %v1293, 2
    %v1295 = vadd.f32 %v1293, %v1294
    %v1296 = vrot.slane %v1295, 1
    %v1297 = vadd.f32 %v1295, %v1296
    %v1298 = vld [vmem:[%s10] sm:$0xff]
    %v1299 = vld [vmem:[%s10 + $0x8] sm:$0xff]
    %v1300 = vld [vmem:[%s10 + $0x10] sm:$0xff]
    %v1309 = vsel %vm788, %v967, %v958
    %v1310 = vsel %vm790, %v976, %v1309
    %v1311 = vsel %vm792, %v985, %v1310
    %v1312 = vsel %vm794, %v994, %v1311
    %v1313 = vsel %vm796, %v1003, %v1312
    %v1314 = vsel %vm798, %v1012, %v1313
    %v1315 = vsel %vm800, %v1021, %v1314
    %v1316 = vsel %vm949, %v1315, 0
    %1318 = vmatpush.msra.mxu0 0.0
    %1319 = vmatpush.msra.mxu0 0.0
    %1320 = vmatpush.msra.mxu0 0.0
    %1321 = vmatpush.msra.mxu0 0.0
    %1322 = vmatpush.msra.mxu0 0.0
    %1323 = vmatpush.msra.mxu0 0.0
    %1324 = vmatpush.msra.mxu0 0.0
    %1325 = vmatpush.msra.mxu0 0.0
    %1326 = vmatpush.msra.mxu0 0.0
    %1327 = vmatpush.msra.mxu0 0.0
    %1328 = vmatpush.msra.mxu0 0.0
    %1329 = vmatpush.msra.mxu0 0.0
    %1330 = vmatpush.msra.mxu0 0.0
    %1331 = vmatpush.msra.mxu0 %v1300
    %1332 = vmatpush.msra.mxu0 %v1299
    %1333 = vmatpush.msra.mxu0 %v1298
    %1334 = vmatmul.f32.gmra.mxu0 %v1316
    %v1335 = vpop.f32.mrf.mxu0
    %v1336 = vadd.f32 0.0, %v1335
    %1337 = vdwg.mxu0
    %v1338 = vadd.f32 %v581, %v1336
    %v1339 = vld [vmem:[%s11] sm:$0xff]
    %v1340 = vld [vmem:[%s11 + $0x8] sm:$0xff]
    %v1341 = vld [vmem:[%s11 + $0x10] sm:$0xff]
    %v1342 = vld [vmem:[%s11 + $0x18] sm:$0xff]
    %v1351 = vsel %vm788, %v1255, %v1248
    %v1352 = vsel %vm790, %v1262, %v1351
    %v1353 = vsel %vm792, %v1269, %v1352
    %v1354 = vsel %vm794, %v1276, %v1353
    %v1355 = vsel %vm796, %v1283, %v1354
    %v1356 = vsel %vm798, %v1290, %v1355
    %v1357 = vsel %vm800, %v1297, %v1356
    %v1358 = vsel %vm1241, %v1357, 0
    %1360 = vmatpush.msra.mxu0 0.0
    %1361 = vmatpush.msra.mxu0 0.0
    %1362 = vmatpush.msra.mxu0 0.0
    %1363 = vmatpush.msra.mxu0 0.0
    %1364 = vmatpush.msra.mxu0 0.0
    %1365 = vmatpush.msra.mxu0 0.0
    %1366 = vmatpush.msra.mxu0 0.0
    %1367 = vmatpush.msra.mxu0 0.0
    %1368 = vmatpush.msra.mxu0 0.0
    %1369 = vmatpush.msra.mxu0 0.0
    %1370 = vmatpush.msra.mxu0 0.0
    %1371 = vmatpush.msra.mxu0 0.0
    %1372 = vmatpush.msra.mxu0 %v1342
    %1373 = vmatpush.msra.mxu0 %v1341
    %1374 = vmatpush.msra.mxu0 %v1340
    %1375 = vmatpush.msra.mxu0 %v1339
    %1376 = vmatmul.f32.gmra.mxu0 %v1358
    %v1377 = vpop.f32.mrf.mxu0
    %v1378 = vadd.f32 0.0, %v1377
    %1379 = vdwg.mxu0
    %v1380 = vadd.f32 %v1338, %v1378
    %v1381 = vmax.f32 %v1380, 0.0
    %v1382 = vld [vmem:[%s12] sm:$0xff]
    %v1383 = vld [vmem:[%s12 + $0x8] sm:$0xff]
    %v1384 = vld [vmem:[%s12 + $0x10] sm:$0xff]
    %v1385 = vld [vmem:[%s12 + $0x18] sm:$0xff]
    %v1386 = vld [vmem:[%s12 + $0x20] sm:$0xff]
    %v1387 = vld [vmem:[%s12 + $0x28] sm:$0xff]
    %v1388 = vld [vmem:[%s12 + $0x30] sm:$0xff]
    %v1389 = vld [vmem:[%s12 + $0x38] sm:$0xff]
    %v1390 = vld [vmem:[%s12 + $0x40] sm:$0xff]
    %v1391 = vld [vmem:[%s12 + $0x48] sm:$0xff]
    %v1392 = vld [vmem:[%s12 + $0x50] sm:$0xff]
    %v1393 = vld [vmem:[%s12 + $0x58] sm:$0xff]
    %v1394 = vld [vmem:[%s12 + $0x60] sm:$0xff]
    %v1395 = vld [vmem:[%s12 + $0x68] sm:$0xff]
    %v1396 = vld [vmem:[%s12 + $0x70] sm:$0xff]
    %v1397 = vld [vmem:[%s12 + $0x78] sm:$0xff]
    %1398 = vmatpush.msra.mxu0 %v1397
    %1399 = vmatpush.msra.mxu0 %v1396
    %1400 = vmatpush.msra.mxu0 %v1395
    %1401 = vmatpush.msra.mxu0 %v1394
    %1402 = vmatpush.msra.mxu0 %v1393
    %1403 = vmatpush.msra.mxu0 %v1392
    %1404 = vmatpush.msra.mxu0 %v1391
    %1405 = vmatpush.msra.mxu0 %v1390
    %1406 = vmatpush.msra.mxu0 %v1389
    %1407 = vmatpush.msra.mxu0 %v1388
    %1408 = vmatpush.msra.mxu0 %v1387
    %1409 = vmatpush.msra.mxu0 %v1386
    %1410 = vmatpush.msra.mxu0 %v1385
    %1411 = vmatpush.msra.mxu0 %v1384
    %1412 = vmatpush.msra.mxu0 %v1383
    %1413 = vmatpush.msra.mxu0 %v1382
    %1414 = vmatmul.f32.gmra.mxu0 %v1381
    %v1415 = vpop.f32.mrf.mxu0
    %v1416 = vadd.f32 %v93, %v1415
    %1417 = vdwg.mxu0
    %1418 = vmax.xlane.f32.xlu0 %v1416
    %v1419 = vpop.xlane.xlu0 %1418
    %v1420 = vsub.f32 %v1416, %v1419
    %v1421 = vmul.f32 %v1420, 1.442695
    %v1422 = vpow.pop %v1421
    %1423 = vadd.xlane.f32.xlu0 %v1422
    %v1424 = vpop.xlane.xlu0 %1423
    %v1425 = vlog2.pop %v1424
    %v1426 = vmul.f32 %v1425, 0.6931472
    %v1427 = vadd.f32 %v1419, %v1426
    %v1428 = vsub.f32 %v1416, %v1427
    %1429 = vst [vmem:[%s14] sm:$0xff] %v1428
    %1430 = vst [vmem:[%s15] sm:$0xff] %v474
    %1431 = vst [vmem:[%s15 + $0x8] sm:$0xff] %v1381
    %1432 = vst.msk [vmem:[%s16] sm:$0xff] %vm804, %v828
    %1433 = vst [vmem:[#allocation2] sm:$0xff] %v474
    %1434 = vst [vmem:[#allocation3 + $0x8] sm:$0xff] %v1381
    // Predicated region
    $region66: #{decode_sequence.1} parent=1 // pred_check
      _
    $region67: #{decode_sequence.1} parent=1 // pred_check_branch
      %1436 = sbr.rel (0) target = $region69
    $region68: #{decode_sequence.1} parent=1 // pred_region
      _
    $region69: #{decode_sequence.1} parent=1 // pred_fallthru
      _
    // Predicated region
    $region70: #{decode_sequence.1} parent=1 // pred_check
      _
    $region71: #{decode_sequence.1} parent=1 // pred_check_branch
      %1438 = sbr.rel (0) target = $region73
    $region72: #{decode_sequence.1} parent=1 // pred_region
      _
    $region73: #{decode_sequence.1} parent=1 // pred_fallthru
      _
    // Predicated region
    $region74: #{decode_sequence.1} parent=1 // pred_check
      _
    $region75: #{decode_sequence.1} parent=1 // pred_check_branch
      %1440 = sbr.rel (0) target = $region77
    $region76: #{decode_sequence.1} parent=1 // pred_region
      _
    $region77: #{decode_sequence.1} parent=1 // pred_fallthru
      _
    // Predicated region
    $region78: #{decode_sequence.1} parent=1 // pred_check
      _
    $region79: #{decode_sequence.1} parent=1 // pred_check_branch
      %1442 = sbr.rel (0) target = $region81
    $region80: #{decode_sequence.1} parent=1 // pred_region
      _
    $region81: #{decode_sequence.1} parent=1 // pred_fallthru
      _
    // Predicated region
    $region82: #{decode_sequence.1} parent=1 // pred_check
      _
    $region83: #{decode_sequence.1} parent=1 // pred_check_branch
      %1444 = sbr.rel (0) target = $region85
    $region84: #{decode_sequence.1} parent=1 // pred_region
      _
    $region85: #{decode_sequence.1} parent=1 // pred_fallthru
      _
    // Predicated region
    $region86: #{decode_sequence.1} parent=1 // pred_check
      _
    $region87: #{decode_sequence.1} parent=1 // pred_check_branch
      %1446 = sbr.rel (0) target = $region89
    $region88: #{decode_sequence.1} parent=1 // pred_region
      _
    $region89: #{decode_sequence.1} parent=1 // pred_fallthru
      _
    %1447 = vsyncpa [#allocation5], 1
    %1448 = vsyncpa [#allocation7], 1

</llo_original>
